<compile_context>
chip_gen: v7x
topology: tpu7x:2x2x1
jax: 0.10.0
libtpu: 0.0.40
codegen_flags: <defaults>
</compile_context>

<pallas_src>
import jax
import jax.numpy as jnp
from jax.experimental import pallas as pl
from jax.experimental.pallas import tpu as pltpu


def _rbf_tile_kernel(x1s_ref, x1n_ref, x2ct_ref, x2n_ref, o_ref):
    # x1s_ref : (tm, D)   centered x1 rows, pre-scaled by 2c = 1/ls^2
    # x1n_ref : (tm, 1)   -c * ||x1c||^2   (pre-scaled row norms)
    # x2ct_ref: (D, tn)   centered x2, transposed -> K-major MXU RHS
    # x2n_ref : (1, tn)   -c * ||x2c||^2   (pre-scaled col norms)
    # o_ref   : (tm, tn)
    cross = jnp.dot(x1s_ref[...], x2ct_ref[...],
                    preferred_element_type=jnp.float32)        # MXU (tm, tn)
    # z = -c * (||x1c||^2 + ||x2c||^2 - 2 * x1c.x2c) = -c * sq_dist
    z = cross + x1n_ref[...] + x2n_ref[...]
    # exp(-c * clamp_min(sq, 0)) == exp(min(z, 0))   since c > 0
    o_ref[...] = jnp.exp(jnp.minimum(z, 0.0)).astype(o_ref.dtype)


def rbf_kernel_matrix(x1, x2=None, ls=1.0, *, tm=256, tn=512):
    """Pallas implementation of RBFKernel().forward(x1, x2).evaluate()."""
    x1 = jnp.asarray(x1, jnp.float32)
    n1, d = x1.shape
    c = 0.5 / (float(ls) ** 2)

    # Cheap O(N*D) preprocessing in plain JAX (XLA fuses these elementwise
    # ops); hoisted out of the O(N1*N2) per-tile loop.
    adjustment = jnp.mean(x1, axis=-2, keepdims=True)              # (1, D)
    x1c = x1 - adjustment                                          # (N1, D)
    x1n = -c * jnp.sum(x1c * x1c, axis=-1, keepdims=True)          # (N1, 1)
    x1s = (2.0 * c) * x1c                                          # (N1, D) scale folded in

    if x2 is None:
        n2 = n1
        x2ct = x1c.T                                               # (D, N2)
        x2n = x1n.T                                                # (1, N2)
    else:
        x2 = jnp.asarray(x2, jnp.float32)
        n2, d2 = x2.shape
        assert d == d2
        x2c = x2 - adjustment                                      # centered by x1's mean
        x2ct = x2c.T                                               # (D, N2)  K-major RHS
        x2n = (-c * jnp.sum(x2c * x2c, axis=-1, keepdims=True)).T  # (1, N2)

    tm = min(tm, n1)
    tn = min(tn, n2)
    grid = (pl.cdiv(n1, tm), pl.cdiv(n2, tn))

    return pl.pallas_call(
        _rbf_tile_kernel,
        out_shape=jax.ShapeDtypeStruct((n1, n2), jnp.float32),
        grid_spec=pltpu.PrefetchScalarGridSpec(
            num_scalar_prefetch=0,
            grid=grid,
            in_specs=[
                pl.BlockSpec((tm, d), lambda i, j: (i, 0)),    # scaled x1c row tile
                pl.BlockSpec((tm, 1), lambda i, j: (i, 0)),    # -c*||x1c||^2
                pl.BlockSpec((d, tn), lambda i, j: (0, j)),    # x2c^T col tile
                pl.BlockSpec((1, tn), lambda i, j: (0, j)),    # -c*||x2c||^2
            ],
            out_specs=pl.BlockSpec((tm, tn), lambda i, j: (i, j)),
        ),
        compiler_params=pltpu.CompilerParams(
            dimension_semantics=("parallel", "parallel")),
    )(x1s, x1n, x2ct, x2n)


def _rbf_reference(x1, x2, ls):
    """Pure-JAX reference mirroring the PyTorch code exactly."""
    adjustment = jnp.mean(x1, axis=-2, keepdims=True)
    x1c = x1 - adjustment
    x2c = x2 - adjustment
    x1_norm = jnp.sum(x1c ** 2, axis=-1, keepdims=True)
    x2_norm = jnp.sum(x2c ** 2, axis=-1, keepdims=True)
    x1_ = jnp.concatenate([-2.0 * x1c, x1_norm, jnp.ones_like(x1_norm)], axis=-1)
    x2_ = jnp.concatenate([x2c, jnp.ones_like(x2_norm), x2_norm], axis=-1)
    res = jnp.maximum(x1_ @ x2_.T, 0.0)
    return jnp.exp(-0.5 * res / ls ** 2)


if __name__ == "__main__":
    key = jax.random.PRNGKey(0)
    k1, k2 = jax.random.split(key)

    # Small but tiling-exercising shapes: grid = (2, 2) with default tiles.
    N1, N2, D = 512, 1024, 32
    x1 = jax.random.normal(k1, (N1, D), dtype=jnp.float32)
    x2 = jax.random.normal(k2, (N2, D), dtype=jnp.float32)

    # x1 vs x2, non-default lengthscale
    ls = 0.7
    out = jax.block_until_ready(rbf_kernel_matrix(x1, x2, ls))
    ref = _rbf_reference(x1, x2, ls)
    assert out.shape == (N1, N2)
    assert jnp.allclose(out, ref, atol=1e-5, rtol=1e-4), "mismatch vs reference (x1, x2)"

    # x2 is None path (symmetric kernel matrix), default lengthscale
    out_s = jax.block_until_ready(rbf_kernel_matrix(x1, None, 1.0))
    ref_s = _rbf_reference(x1, x1, 1.0)
    assert out_s.shape == (N1, N1)
    assert jnp.allclose(out_s, ref_s, atol=1e-5, rtol=1e-4), "mismatch vs reference (x1 only)"

    # Smaller-tile path to exercise a denser grid (4 x 8 tiles).
    out_t = jax.block_until_ready(rbf_kernel_matrix(x1, x2, ls, tm=128, tn=128))
    assert jnp.allclose(out_t, ref, atol=1e-5, rtol=1e-4), "mismatch vs reference (small tiles)"

    print("KERNEL_OK")
</pallas_src>

<mosaic_0001>
module attributes {stable_mosaic.version = 11 : i64} {
  func.func @_rbf_tile_kernel(%arg0: i32, %arg1: i32, %arg2: memref<256x32xf32, #tpu.memory_space<vmem>>, %arg3: memref<256x1xf32, #tpu.memory_space<vmem>>, %arg4: memref<32x512xf32, #tpu.memory_space<vmem>>, %arg5: memref<1x512xf32, #tpu.memory_space<vmem>>, %arg6: memref<256x512xf32, #tpu.memory_space<vmem>>) attributes {dimension_semantics = [#tpu.dimension_semantics<parallel>, #tpu.dimension_semantics<parallel>], iteration_bounds = array<i64: 2, 2>, scalar_prefetch = 0 : i64, scratch_operands = 0 : i64, tpu.core_type = #tpu.core_type<tc>, window_params = [{transform_indices = @transform_0, window_bounds = array<i64: 256, 32>}, {transform_indices = @transform_1, window_bounds = array<i64: 256, 1>}, {transform_indices = @transform_2, window_bounds = array<i64: 32, 512>}, {transform_indices = @transform_3, window_bounds = array<i64: 1, 512>}, {transform_indices = @transform_4, window_bounds = array<i64: 256, 512>}]} {
    %c0 = arith.constant 0 : index
    %c0_0 = arith.constant 0 : index
    %0 = vector.load %arg2[%c0, %c0_0] : memref<256x32xf32, #tpu.memory_space<vmem>>, vector<256x32xf32>
    %c0_1 = arith.constant 0 : index
    %c0_2 = arith.constant 0 : index
    %1 = vector.load %arg4[%c0_1, %c0_2] : memref<32x512xf32, #tpu.memory_space<vmem>>, vector<32x512xf32>
    %cst = arith.constant dense<0.000000e+00> : vector<256x512xf32>
    %2 = tpu.matmul %0, %1, %cst {dimension_numbers = #tpu.dot_dimension_numbers<[1], [0], [0], [1], [0, 0, 1, 1], [], []>} : vector<256x32xf32>, vector<32x512xf32>, vector<256x512xf32> -> vector<256x512xf32>
    %c0_3 = arith.constant 0 : index
    %c0_4 = arith.constant 0 : index
    %3 = vector.load %arg3[%c0_3, %c0_4] : memref<256x1xf32, #tpu.memory_space<vmem>>, vector<256x1xf32>
    %4 = vector.broadcast %3 : vector<256x1xf32> to vector<256x512xf32>
    %5 = arith.addf %2, %4 : vector<256x512xf32>
    %c0_5 = arith.constant 0 : index
    %c0_6 = arith.constant 0 : index
    %6 = vector.load %arg5[%c0_5, %c0_6] : memref<1x512xf32, #tpu.memory_space<vmem>>, vector<1x512xf32>
    %7 = vector.broadcast %6 : vector<1x512xf32> to vector<256x512xf32>
    %8 = arith.addf %5, %7 : vector<256x512xf32>
    %cst_7 = arith.constant 0.000000e+00 : f32
    %9 = vector.broadcast %cst_7 : f32 to vector<256x512xf32>
    %10 = arith.minimumf %8, %9 : vector<256x512xf32>
    %11 = math.exp %10 : vector<256x512xf32>
    %c0_8 = arith.constant 0 : index
    %c0_9 = arith.constant 0 : index
    %12 = vector.load %arg6[%c0_8, %c0_9] : memref<256x512xf32, #tpu.memory_space<vmem>>, vector<256x512xf32>
    tpu.vector_store %arg6[%c0_8, %c0_9], %11 {strides = array<i32>} : memref<256x512xf32, #tpu.memory_space<vmem>>, vector<256x512xf32>,
    return
  }
  func.func @transform_0(%arg0: i32, %arg1: i32) -> (i32, i32) {
    %c0_i32 = arith.constant 0 : i32
    %c0_i32_0 = arith.constant 0 : i32
    return %arg0, %c0_i32 : i32, i32
  }
  func.func @transform_1(%arg0: i32, %arg1: i32) -> (i32, i32) {
    %c0_i32 = arith.constant 0 : i32
    %c0_i32_0 = arith.constant 0 : i32
    return %arg0, %c0_i32 : i32, i32
  }
  func.func @transform_2(%arg0: i32, %arg1: i32) -> (i32, i32) {
    %c0_i32 = arith.constant 0 : i32
    %c0_i32_0 = arith.constant 0 : i32
    return %c0_i32, %arg1 : i32, i32
  }
  func.func @transform_3(%arg0: i32, %arg1: i32) -> (i32, i32) {
    %c0_i32 = arith.constant 0 : i32
    %c0_i32_0 = arith.constant 0 : i32
    return %c0_i32, %arg1 : i32, i32
  }
  func.func @transform_4(%arg0: i32, %arg1: i32) -> (i32, i32) {
    %c0_i32 = arith.constant 0 : i32
    return %arg0, %arg1 : i32, i32
  }
}

</mosaic_0001>

<llo_original>
// kernel: tpu_custom_call.1
$region0: #{tpu_custom_call.1}
  #allocation0 [shape = 'u32[]', space=smem, size = 0x4, offset = 0x4, fixed_abs, tag = 'smem constant byte address 0x4 - core index']
  #allocation1 [shape = 'u32[144,128]{1,0:T(1,128)}', space=vmem, size = 0x12000, scoped, tag = 'internal scratch']
  %s0 = inlined_call_operand.vmem [shape: f32[512,32], index: 0, kind: input, shape index: {}]
  %s1 = inlined_call_operand.vmem [shape: f32[512,1], index: 1, kind: input, shape index: {}]
  %s2 = inlined_call_operand.hbm [shape: f32[32,1024], index: 2, kind: input, shape index: {}]
  %s3 = inlined_call_operand.hbm [shape: f32[1,1024], index: 3, kind: input, shape index: {}]
  %s4 = inlined_call_operand.hbm [shape: f32[512,1024], index: 4, kind: output, shape index: {}]
  %s5 = sld [smem:[#allocation0]]
  $region57: #{tpu_custom_call.1} parent=0
    _
  %s7 = ssub.s32 1, %s5
  %s8 = scalar_select 0, %s7, %s5
  $region1: #{tpu_custom_call.1} parent=0
    #allocation2 [shape = 'u8[131072]{0}', space=vmem, size = 0x20000, scoped, tag = 'input window, operand 2']
    #allocation3 [shape = 's32[2]{0}', space=sflag, size = 0x8, scoped, tag = 'scoped memory for tpu_custom_call.1']
    #allocation4 [shape = 's32[2]{0}', space=sflag, size = 0x8, scoped, tag = 'scoped memory for tpu_custom_call.1']
    #allocation5 [shape = 'u8[4096]{0}', space=vmem, size = 0x1000, scoped, tag = 'input window, operand 3']
    #allocation6 [shape = 's32[2]{0}', space=sflag, size = 0x8, scoped, tag = 'scoped memory for tpu_custom_call.1']
    #allocation7 [shape = 'u8[1048576]{0}', space=vmem, size = 0x100000, scoped, tag = 'output window, operand 0']
    %9 = vsyncpa [#allocation3], 0
    %s10 = scalar_lea.sflag [#allocation3], 1
    %11 = vsyncpa %s10, 0
    %12 = vsyncpa [#allocation6], 0
    %s13 = scalar_lea.sflag [#allocation6], 1
    %14 = vsyncpa %s13, 0
    %15 = vsyncpa [#allocation4], 0
    %s16 = scalar_lea.sflag [#allocation4], 1
    %17 = vsyncpa %s16, 0
    loop: start=0, step=1, limit=6
    $region2: #{tpu_custom_call.1} parent=1 // loop_pre_header
      _
    $region3: #{tpu_custom_call.1} parent=1 // loop_header
      %s19 = sphi 0, %s23
      %p20 = scmp.ge.s32.totalorder %s19, 6
      %s26 = sphi 0, %s38
      %s27 = sphi 0, %s34
      %s28 = sphi 0, %s26
      %s29 = sphi 0, %s27
      %s30 = sphi 0, %s28
      %s31 = sphi 0, %s29
      %s41 = sphi 0, %s43
      %s44 = sphi 0, %s41
      %s45 = sphi 0, %s44
      %s61 = sphi 0, %s45
      %s67 = sphi 0, %s69
      %s70 = sphi 0, %s67
      %s71 = sphi 0, %s70
      %s87 = sphi 0, %s71
      %s93 = sphi 0, %s95
      %s96 = sphi 0, %s93
      %s97 = sphi 0, %s96
      %s113 = sphi 0, %s97
      %s119 = sphi 0, %s121
      %s122 = sphi 0, %s119
      %s123 = sphi 0, %s122
      %s139 = sphi 0, %s123
      %s147 = sphi 0, %s149
      %s150 = sphi 0, %s147
      %s151 = sphi 0, %s150
      %s167 = sphi 0, %s151
    $region4: #{tpu_custom_call.1} parent=1 // loop_header_branch
      %22 = sbr.rel (%p20) target = $region8
    $region5: #{tpu_custom_call.1} parent=1 // loop_body
      %s24 = ssub.s32 %s19, 1
      %s25 = ssub.s32 %s19, 2
      %s32 = sadd.s32 1, %s27
      %p33 = scmp.ge.s32.totalorder %s32, 2
      %s34 = scalar_select %p33, 0, %s32
      %s35 = sadd.s32 1, %s26
      %s36 = scalar_select %p33, %s35, %s26
      %p37 = scmp.ge.s32.totalorder %s36, 2
      %s38 = scalar_select %p37, 0, %s36
      %s39 = ssub.s32 %s26, %s38
      %p40 = scmp.eq.s32.totalorder %s39, 0
      %s42 = sadd.s32 %s41, 1
      %s43 = scalar_select %p40, %s41, %s42
      %p46 = pneg %p40
      %p47 = scmp.eq.s32.totalorder %s19, 3
      %p48 = por %p46, %p47
      %p49 = scmp.ne.s32.totalorder %s41, %s44
      %p50 = scmp.eq.s32.totalorder %s19, 0
      %p51 = por %p49, %p50
      %p52 = scmp.ne.s32.totalorder %s41, %s44
      %p53 = scmp.eq.s32.totalorder %s24, 3
      %p54 = por %p52, %p53
      %p55 = scmp.ne.s32.totalorder %s44, %s45
      %p56 = scmp.eq.s32.totalorder %s24, 0
      %p57 = por %p55, %p56
      %p58 = scmp.ne.s32.totalorder %s44, %s45
      %p59 = scmp.eq.s32.totalorder %s25, 3
      %p60 = por %p58, %p59
      %p62 = scmp.ne.s32.totalorder %s45, %s61
      %p63 = scmp.eq.s32.totalorder %s25, 0
      %p64 = por %p62, %p63
      %s65 = ssub.s32 %s26, %s38
      %p66 = scmp.eq.s32.totalorder %s65, 0
      %s68 = sadd.s32 %s67, 1
      %s69 = scalar_select %p66, %s67, %s68
      %p72 = pneg %p66
      %p73 = scmp.eq.s32.totalorder %s19, 3
      %p74 = por %p72, %p73
      %p75 = scmp.ne.s32.totalorder %s67, %s70
      %p76 = scmp.eq.s32.totalorder %s19, 0
      %p77 = por %p75, %p76
      %p78 = scmp.ne.s32.totalorder %s67, %s70
      %p79 = scmp.eq.s32.totalorder %s24, 3
      %p80 = por %p78, %p79
      %p81 = scmp.ne.s32.totalorder %s70, %s71
      %p82 = scmp.eq.s32.totalorder %s24, 0
      %p83 = por %p81, %p82
      %p84 = scmp.ne.s32.totalorder %s70, %s71
      %p85 = scmp.eq.s32.totalorder %s25, 3
      %p86 = por %p84, %p85
      %p88 = scmp.ne.s32.totalorder %s71, %s87
      %p89 = scmp.eq.s32.totalorder %s25, 0
      %p90 = por %p88, %p89
      %s91 = ssub.s32 %s27, %s34
      %p92 = scmp.eq.s32.totalorder %s91, 0
      %s94 = sadd.s32 %s93, 1
      %s95 = scalar_select %p92, %s93, %s94
      %p98 = pneg %p92
      %p99 = scmp.eq.s32.totalorder %s19, 3
      %p100 = por %p98, %p99
      %p101 = scmp.ne.s32.totalorder %s93, %s96
      %p102 = scmp.eq.s32.totalorder %s19, 0
      %p103 = por %p101, %p102
      %p104 = scmp.ne.s32.totalorder %s93, %s96
      %p105 = scmp.eq.s32.totalorder %s24, 3
      %p106 = por %p104, %p105
      %p107 = scmp.ne.s32.totalorder %s96, %s97
      %p108 = scmp.eq.s32.totalorder %s24, 0
      %p109 = por %p107, %p108
      %p110 = scmp.ne.s32.totalorder %s96, %s97
      %p111 = scmp.eq.s32.totalorder %s25, 3
      %p112 = por %p110, %p111
      %p114 = scmp.ne.s32.totalorder %s97, %s113
      %p115 = scmp.eq.s32.totalorder %s25, 0
      %p116 = por %p114, %p115
      %s117 = ssub.s32 %s27, %s34
      %p118 = scmp.eq.s32.totalorder %s117, 0
      %s120 = sadd.s32 %s119, 1
      %s121 = scalar_select %p118, %s119, %s120
      %p124 = pneg %p118
      %p125 = scmp.eq.s32.totalorder %s19, 3
      %p126 = por %p124, %p125
      %p127 = scmp.ne.s32.totalorder %s119, %s122
      %p128 = scmp.eq.s32.totalorder %s19, 0
      %p129 = por %p127, %p128
      %p130 = scmp.ne.s32.totalorder %s119, %s122
      %p131 = scmp.eq.s32.totalorder %s24, 3
      %p132 = por %p130, %p131
      %p133 = scmp.ne.s32.totalorder %s122, %s123
      %p134 = scmp.eq.s32.totalorder %s24, 0
      %p135 = por %p133, %p134
      %p136 = scmp.ne.s32.totalorder %s122, %s123
      %p137 = scmp.eq.s32.totalorder %s25, 3
      %p138 = por %p136, %p137
      %p140 = scmp.ne.s32.totalorder %s123, %s139
      %p141 = scmp.eq.s32.totalorder %s25, 0
      %p142 = por %p140, %p141
      %s143 = ssub.s32 %s26, %s38
      %s144 = ssub.s32 %s27, %s34
      %s145 = sor.u32 %s143, %s144
      %p146 = scmp.eq.s32.totalorder %s145, 0
      %s148 = sadd.s32 %s147, 1
      %s149 = scalar_select %p146, %s147, %s148
      %p152 = pneg %p146
      %p153 = scmp.eq.s32.totalorder %s19, 3
      %p154 = por %p152, %p153
      %p155 = scmp.ne.s32.totalorder %s147, %s150
      %p156 = scmp.eq.s32.totalorder %s19, 0
      %p157 = por %p155, %p156
      %p158 = scmp.ne.s32.totalorder %s147, %s150
      %p159 = scmp.eq.s32.totalorder %s24, 3
      %p160 = por %p158, %p159
      %p161 = scmp.ne.s32.totalorder %s150, %s151
      %p162 = scmp.eq.s32.totalorder %s24, 0
      %p163 = por %p161, %p162
      %p164 = scmp.ne.s32.totalorder %s150, %s151
      %p165 = scmp.eq.s32.totalorder %s25, 3
      %p166 = por %p164, %p165
      %p168 = scmp.ne.s32.totalorder %s151, %s167
      %p169 = scmp.eq.s32.totalorder %s25, 0
      %p170 = por %p168, %p169
      %p171 = scmp.le.s32.totalorder 1, %s19
      %p172 = scmp.lt.s32.totalorder %s19, 5
      %p173 = pnand %p171, %p172
      %p174 = pneg %p173
      // Predicated region
      $region9: #{tpu_custom_call.1} parent=5 // pred_check
        _
      $region10: #{tpu_custom_call.1} parent=5 // pred_check_branch
        %176 = sbr.rel (%p173) target = $region12
      $region11: #{tpu_custom_call.1} parent=5 // pred_region
        %s177 = ssub.s32 %s19, 1
      $region12: #{tpu_custom_call.1} parent=5 // pred_fallthru
        _
      %p178 = scmp.lt.s32.totalorder %s19, 4
      // Predicated region
      $region13: #{tpu_custom_call.1} parent=5 // pred_check
        %p179 = pneg %p178
      $region14: #{tpu_custom_call.1} parent=5 // pred_check_branch
        %181 = sbr.rel (%p179) target = $region16
      $region15: #{tpu_custom_call.1} parent=5 // pred_region
        // Predicated region
        $region17: #{tpu_custom_call.1} parent=15 // pred_check
          %p182 = pneg %p51
        $region18: #{tpu_custom_call.1} parent=15 // pred_check_branch
          %184 = sbr.rel (%p182) target = $region20
        $region19: #{tpu_custom_call.1} parent=15 // pred_region
          %s185 = smul.u32 32, %s26
          %p186 = scmp.lt.s32.totalorder %s185, 63
          %s187 = scalar_select %p186, %s185, 63
          %s188 = smul.addr %s187, 8
          %s189 = scalar_lea.vmem %s0, %s188
          %s190 = smul.u32 32, %s26
        $region20: #{tpu_custom_call.1} parent=15 // pred_fallthru
          _
        // Predicated region
        $region21: #{tpu_custom_call.1} parent=15 // pred_check
          %p191 = pneg %p77
        $region22: #{tpu_custom_call.1} parent=15 // pred_check_branch
          %193 = sbr.rel (%p191) target = $region24
        $region23: #{tpu_custom_call.1} parent=15 // pred_region
          %s194 = smul.u32 32, %s26
          %p195 = scmp.lt.s32.totalorder %s194, 63
          %s196 = scalar_select %p195, %s194, 63
          %s197 = smul.addr %s196, 8
          %s198 = scalar_lea.vmem %s1, %s197
          %s199 = smul.u32 32, %s26
        $region24: #{tpu_custom_call.1} parent=15 // pred_fallthru
          _
        // Predicated region
        $region25: #{tpu_custom_call.1} parent=15 // pred_check
          %p200 = pneg %p103
        $region26: #{tpu_custom_call.1} parent=15 // pred_check_branch
          %202 = sbr.rel (%p200) target = $region28
        $region27: #{tpu_custom_call.1} parent=15 // pred_region
          %s203 = sand.u32 %s93, 1
          %s204 = scalar_lea.sflag [#allocation3], %s203
          %s205 = sand.u32 %s93, 1
          %s206 = smul.addr %s205, 128
          %s207 = scalar_lea.vmem [#allocation2], %s206
          %s208 = smul.u32 4, %s27
          %s210 = ssub.s32 2048, 2048
          %211 = vsyncadd %s204, %s210
          %s212 = smul.addr %s208, 128
          %s213 = scalar_lea.hbm %s2, %s212
          %s214 = sshll.u32 %s207, 4
          %s215 = int_to_ptr.vmem [resolvable:$true] %s214
          %220 = dma.hbm_to_vmem [thread:$0]  %s213, 2048, %s215, %s204, 1024, 512, 32
        $region28: #{tpu_custom_call.1} parent=15 // pred_fallthru
          _
        // Predicated region
        $region29: #{tpu_custom_call.1} parent=15 // pred_check
          %p221 = pneg %p129
        $region30: #{tpu_custom_call.1} parent=15 // pred_check_branch
          %223 = sbr.rel (%p221) target = $region32
        $region31: #{tpu_custom_call.1} parent=15 // pred_region
          %s224 = sand.u32 %s119, 1
          %s225 = scalar_lea.sflag [#allocation6], %s224
          %s226 = sand.u32 %s119, 1
          %s227 = smul.addr %s226, 4
          %s228 = scalar_lea.vmem [#allocation5], %s227
          %s229 = smul.u32 4, %s27
          %s231 = ssub.s32 64, 64
          %232 = vsyncadd %s225, %s231
          %s233 = smul.addr %s229, 16
          %s234 = scalar_lea.hbm %s3, %s233
          %s236 = sshll.u32 %s228, 4
          %s237 = int_to_ptr.vmem [resolvable:$true] %s236
          %239 = dma.hbm_to_vmem [thread:$0]  %s234, 64, %s237, %s225
        $region32: #{tpu_custom_call.1} parent=15 // pred_fallthru
          _
      $region16: #{tpu_custom_call.1} parent=5 // pred_fallthru
        _
      %p240 = scmp.le.s32.totalorder 1, %s19
      %p241 = scmp.lt.s32.totalorder %s19, 5
      %p242 = pnand %p240, %p241
      %p243 = pneg %p242
      // Predicated region
      $region33: #{tpu_custom_call.1} parent=5 // pred_check
        _
      $region34: #{tpu_custom_call.1} parent=5 // pred_check_branch
        %245 = sbr.rel (%p242) target = $region36
      $region35: #{tpu_custom_call.1} parent=5 // pred_region
        %s246 = ssub.s32 %s19, 1
        %s247 = sand.u32 %s96, 1
        %s248 = scalar_lea.sflag [#allocation3], %s247
        %s249 = sand.u32 %s96, 1
        %s250 = smul.addr %s249, 128
        %s251 = scalar_lea.vmem [#allocation2], %s250
        // Predicated region
        $region37: #{tpu_custom_call.1} parent=35 // pred_check
          %p252 = pneg %p109
        $region38: #{tpu_custom_call.1} parent=35 // pred_check_branch
          %254 = sbr.rel (%p252) target = $region40
        $region39: #{tpu_custom_call.1} parent=35 // pred_region
          %255 = dma.done %s248, 2048
        $region40: #{tpu_custom_call.1} parent=35 // pred_fallthru
          _
        %s256 = sand.u32 %s122, 1
        %s257 = scalar_lea.sflag [#allocation6], %s256
        %s258 = sand.u32 %s122, 1
        %s259 = smul.addr %s258, 4
        %s260 = scalar_lea.vmem [#allocation5], %s259
        // Predicated region
        $region41: #{tpu_custom_call.1} parent=35 // pred_check
          %p261 = pneg %p135
        $region42: #{tpu_custom_call.1} parent=35 // pred_check_branch
          %263 = sbr.rel (%p261) target = $region44
        $region43: #{tpu_custom_call.1} parent=35 // pred_region
          %264 = dma.done %s257, 64
        $region44: #{tpu_custom_call.1} parent=35 // pred_fallthru
          _
        %s265 = smul.u32 32, %s28
        %p266 = scmp.lt.s32.totalorder %s265, 63
        %s267 = scalar_select %p266, %s265, 63
        %s268 = smul.addr %s267, 8
        %s269 = scalar_lea.vmem %s0, %s268
        %p270 = pneg %p57
        %p271 = pneg %p54
        %s272 = smul.u32 32, %s28
        %p273 = scmp.lt.s32.totalorder %s272, 63
        %s274 = scalar_select %p273, %s272, 63
        %s275 = smul.addr %s274, 8
        %s276 = scalar_lea.vmem %s1, %s275
        %p277 = pneg %p83
        %p278 = pneg %p80
        %s279 = sand.u32 %s96, 1
        %s280 = scalar_lea.sflag [#allocation3], %s279
        %s281 = sand.u32 %s96, 1
        %s282 = smul.addr %s281, 128
        %s283 = scalar_lea.vmem [#allocation2], %s282
        %p284 = pneg %p109
        %p285 = pneg %p106
        %s286 = sand.u32 %s122, 1
        %s287 = scalar_lea.sflag [#allocation6], %s286
        %s288 = sand.u32 %s122, 1
        %s289 = smul.addr %s288, 4
        %s290 = scalar_lea.vmem [#allocation5], %s289
        %p291 = pneg %p135
        %p292 = pneg %p132
        %p293 = pneg %p163
        %p294 = pneg %p160
        %s295 = sand.u32 %s150, 1
        %s296 = scalar_lea.sflag [#allocation4], %s295
        %s297 = sand.u32 %s150, 1
        %s298 = smul.addr %s297, 1024
        %s299 = scalar_lea.vmem [#allocation7], %s298
        %s300 = smul.u32 32, %s28
        %p301 = scmp.lt.s32.totalorder %s300, 63
        %s302 = scalar_select %p301, %s300, 63
        %s303 = smul.addr %s302, 8
        %s304 = scalar_lea.vmem %s0, %s303
        %s305 = smul.u32 32, %s28
        %s306 = smul.u32 32, %s28
        %p307 = scmp.lt.s32.totalorder %s306, 63
        %s308 = scalar_select %p307, %s306, 63
        %s309 = smul.addr %s308, 8
        %s310 = scalar_lea.vmem %s1, %s309
        %s311 = smul.u32 32, %s28
        %s312 = smul.u32 4, %s29
        %s313 = smul.u32 4, %s29
        %s314 = smul.u32 32, %s28
        %s315 = smul.u32 4, %s29
        %v316 = vld [vmem:[%s304] sm:$0xff]
        %v317 = vld [vmem:[%s304 + $0x8] sm:$0xff]
        %v318 = vld [vmem:[%s304 + $0x10] sm:$0xff]
        %v319 = vld [vmem:[%s304 + $0x18] sm:$0xff]
        %v320 = vld [vmem:[%s304 + $0x20] sm:$0xff]
        %v321 = vld [vmem:[%s304 + $0x28] sm:$0xff]
        %v322 = vld [vmem:[%s304 + $0x30] sm:$0xff]
        %v323 = vld [vmem:[%s304 + $0x38] sm:$0xff]
        %v324 = vld [vmem:[%s304 + $0x40] sm:$0xff]
        %v325 = vld [vmem:[%s304 + $0x48] sm:$0xff]
        %v326 = vld [vmem:[%s304 + $0x50] sm:$0xff]
        %v327 = vld [vmem:[%s304 + $0x58] sm:$0xff]
        %v328 = vld [vmem:[%s304 + $0x60] sm:$0xff]
        %v329 = vld [vmem:[%s304 + $0x68] sm:$0xff]
        %v330 = vld [vmem:[%s304 + $0x70] sm:$0xff]
        %v331 = vld [vmem:[%s304 + $0x78] sm:$0xff]
        %v332 = vld [vmem:[%s304 + $0x80] sm:$0xff]
        %v333 = vld [vmem:[%s304 + $0x88] sm:$0xff]
        %v334 = vld [vmem:[%s304 + $0x90] sm:$0xff]
        %v335 = vld [vmem:[%s304 + $0x98] sm:$0xff]
        %v336 = vld [vmem:[%s304 + $0xa0] sm:$0xff]
        %v337 = vld [vmem:[%s304 + $0xa8] sm:$0xff]
        %v338 = vld [vmem:[%s304 + $0xb0] sm:$0xff]
        %v339 = vld [vmem:[%s304 + $0xb8] sm:$0xff]
        %v340 = vld [vmem:[%s304 + $0xc0] sm:$0xff]
        %v341 = vld [vmem:[%s304 + $0xc8] sm:$0xff]
        %v342 = vld [vmem:[%s304 + $0xd0] sm:$0xff]
        %v343 = vld [vmem:[%s304 + $0xd8] sm:$0xff]
        %v344 = vld [vmem:[%s304 + $0xe0] sm:$0xff]
        %v345 = vld [vmem:[%s304 + $0xe8] sm:$0xff]
        %v346 = vld [vmem:[%s304 + $0xf0] sm:$0xff]
        %v347 = vld [vmem:[%s304 + $0xf8] sm:$0xff]
        %v348 = vld [vmem:[%s251] sm:$0xff]
        %v349 = vld [vmem:[%s251 + $0x8] sm:$0xff]
        %v350 = vld [vmem:[%s251 + $0x10] sm:$0xff]
        %v351 = vld [vmem:[%s251 + $0x18] sm:$0xff]
        %v352 = vld [vmem:[%s251 + $0x20] sm:$0xff]
        %v353 = vld [vmem:[%s251 + $0x28] sm:$0xff]
        %v354 = vld [vmem:[%s251 + $0x30] sm:$0xff]
        %v355 = vld [vmem:[%s251 + $0x38] sm:$0xff]
        %v356 = vld [vmem:[%s251 + $0x40] sm:$0xff]
        %v357 = vld [vmem:[%s251 + $0x48] sm:$0xff]
        %v358 = vld [vmem:[%s251 + $0x50] sm:$0xff]
        %v359 = vld [vmem:[%s251 + $0x58] sm:$0xff]
        %v360 = vld [vmem:[%s251 + $0x60] sm:$0xff]
        %v361 = vld [vmem:[%s251 + $0x68] sm:$0xff]
        %v362 = vld [vmem:[%s251 + $0x70] sm:$0xff]
        %v363 = vld [vmem:[%s251 + $0x78] sm:$0xff]
        %v364 = vld [vmem:[%s310] sm:$0xff]
        %v365 = vld [vmem:[%s310 + $0x8] sm:$0xff]
        %v366 = vld [vmem:[%s310 + $0x10] sm:$0xff]
        %v367 = vld [vmem:[%s310 + $0x18] sm:$0xff]
        %v368 = vld [vmem:[%s310 + $0x20] sm:$0xff]
        %v369 = vld [vmem:[%s310 + $0x28] sm:$0xff]
        %v370 = vld [vmem:[%s310 + $0x30] sm:$0xff]
        %v371 = vld [vmem:[%s310 + $0x38] sm:$0xff]
        %v372 = vld [vmem:[%s310 + $0x40] sm:$0xff]
        %v373 = vld [vmem:[%s310 + $0x48] sm:$0xff]
        %v374 = vld [vmem:[%s310 + $0x50] sm:$0xff]
        %v375 = vld [vmem:[%s310 + $0x58] sm:$0xff]
        %v376 = vld [vmem:[%s310 + $0x60] sm:$0xff]
        %v377 = vld [vmem:[%s310 + $0x68] sm:$0xff]
        %v378 = vld [vmem:[%s310 + $0x70] sm:$0xff]
        %v379 = vld [vmem:[%s310 + $0x78] sm:$0xff]
        %v380 = vld [vmem:[%s310 + $0x80] sm:$0xff]
        %v381 = vld [vmem:[%s310 + $0x88] sm:$0xff]
        %v382 = vld [vmem:[%s310 + $0x90] sm:$0xff]
        %v383 = vld [vmem:[%s310 + $0x98] sm:$0xff]
        %v384 = vld [vmem:[%s310 + $0xa0] sm:$0xff]
        %v385 = vld [vmem:[%s310 + $0xa8] sm:$0xff]
        %v386 = vld [vmem:[%s310 + $0xb0] sm:$0xff]
        %v387 = vld [vmem:[%s310 + $0xb8] sm:$0xff]
        %v388 = vld [vmem:[%s310 + $0xc0] sm:$0xff]
        %v389 = vld [vmem:[%s310 + $0xc8] sm:$0xff]
        %v390 = vld [vmem:[%s310 + $0xd0] sm:$0xff]
        %v391 = vld [vmem:[%s310 + $0xd8] sm:$0xff]
        %v392 = vld [vmem:[%s310 + $0xe0] sm:$0xff]
        %v393 = vld [vmem:[%s310 + $0xe8] sm:$0xff]
        %v394 = vld [vmem:[%s310 + $0xf0] sm:$0xff]
        %v395 = vld [vmem:[%s310 + $0xf8] sm:$0xff]
        %397 = vset.pattern.permute.xlu0 0
        %398 = vperm.xlu0 %397, %v364
        %v399 = vpop.permute.xlu0 %398
        %402 = vset.pattern.permute.xlu0 0
        %403 = vperm.xlu0 %402, %v365
        %v404 = vpop.permute.xlu0 %403
        %407 = vset.pattern.permute.xlu0 0
        %408 = vperm.xlu0 %407, %v366
        %v409 = vpop.permute.xlu0 %408
        %412 = vset.pattern.permute.xlu0 0
        %413 = vperm.xlu0 %412, %v367
        %v414 = vpop.permute.xlu0 %413
        %417 = vset.pattern.permute.xlu0 0
        %418 = vperm.xlu0 %417, %v368
        %v419 = vpop.permute.xlu0 %418
        %422 = vset.pattern.permute.xlu0 0
        %423 = vperm.xlu0 %422, %v369
        %v424 = vpop.permute.xlu0 %423
        %427 = vset.pattern.permute.xlu0 0
        %428 = vperm.xlu0 %427, %v370
        %v429 = vpop.permute.xlu0 %428
        %432 = vset.pattern.permute.xlu0 0
        %433 = vperm.xlu0 %432, %v371
        %v434 = vpop.permute.xlu0 %433
        %437 = vset.pattern.permute.xlu0 0
        %438 = vperm.xlu0 %437, %v372
        %v439 = vpop.permute.xlu0 %438
        %442 = vset.pattern.permute.xlu0 0
        %443 = vperm.xlu0 %442, %v373
        %v444 = vpop.permute.xlu0 %443
        %447 = vset.pattern.permute.xlu0 0
        %448 = vperm.xlu0 %447, %v374
        %v449 = vpop.permute.xlu0 %448
        %452 = vset.pattern.permute.xlu0 0
        %453 = vperm.xlu0 %452, %v375
        %v454 = vpop.permute.xlu0 %453
        %457 = vset.pattern.permute.xlu0 0
        %458 = vperm.xlu0 %457, %v376
        %v459 = vpop.permute.xlu0 %458
        %462 = vset.pattern.permute.xlu0 0
        %463 = vperm.xlu0 %462, %v377
        %v464 = vpop.permute.xlu0 %463
        %467 = vset.pattern.permute.xlu0 0
        %468 = vperm.xlu0 %467, %v378
        %v469 = vpop.permute.xlu0 %468
        %472 = vset.pattern.permute.xlu0 0
        %473 = vperm.xlu0 %472, %v379
        %v474 = vpop.permute.xlu0 %473
        %477 = vset.pattern.permute.xlu0 0
        %478 = vperm.xlu0 %477, %v380
        %v479 = vpop.permute.xlu0 %478
        %482 = vset.pattern.permute.xlu0 0
        %483 = vperm.xlu0 %482, %v381
        %v484 = vpop.permute.xlu0 %483
        %487 = vset.pattern.permute.xlu0 0
        %488 = vperm.xlu0 %487, %v382
        %v489 = vpop.permute.xlu0 %488
        %492 = vset.pattern.permute.xlu0 0
        %493 = vperm.xlu0 %492, %v383
        %v494 = vpop.permute.xlu0 %493
        %497 = vset.pattern.permute.xlu0 0
        %498 = vperm.xlu0 %497, %v384
        %v499 = vpop.permute.xlu0 %498
        %502 = vset.pattern.permute.xlu0 0
        %503 = vperm.xlu0 %502, %v385
        %v504 = vpop.permute.xlu0 %503
        %507 = vset.pattern.permute.xlu0 0
        %508 = vperm.xlu0 %507, %v386
        %v509 = vpop.permute.xlu0 %508
        %512 = vset.pattern.permute.xlu0 0
        %513 = vperm.xlu0 %512, %v387
        %v514 = vpop.permute.xlu0 %513
        %517 = vset.pattern.permute.xlu0 0
        %518 = vperm.xlu0 %517, %v388
        %v519 = vpop.permute.xlu0 %518
        %522 = vset.pattern.permute.xlu0 0
        %523 = vperm.xlu0 %522, %v389
        %v524 = vpop.permute.xlu0 %523
        %527 = vset.pattern.permute.xlu0 0
        %528 = vperm.xlu0 %527, %v390
        %v529 = vpop.permute.xlu0 %528
        %532 = vset.pattern.permute.xlu0 0
        %533 = vperm.xlu0 %532, %v391
        %v534 = vpop.permute.xlu0 %533
        %537 = vset.pattern.permute.xlu0 0
        %538 = vperm.xlu0 %537, %v392
        %v539 = vpop.permute.xlu0 %538
        %542 = vset.pattern.permute.xlu0 0
        %543 = vperm.xlu0 %542, %v393
        %v544 = vpop.permute.xlu0 %543
        %547 = vset.pattern.permute.xlu0 0
        %548 = vperm.xlu0 %547, %v394
        %v549 = vpop.permute.xlu0 %548
        %552 = vset.pattern.permute.xlu0 0
        %553 = vperm.xlu0 %552, %v395
        %v554 = vpop.permute.xlu0 %553
        %vm556 = vcmask 261120
        %v558 = vsel %vm556, %v316, 0
        %v561 = vsel %vm556, %v317, 0
        %v564 = vsel %vm556, %v318, 0
        %v567 = vsel %vm556, %v319, 0
        %v570 = vsel %vm556, %v320, 0
        %v573 = vsel %vm556, %v321, 0
        %v576 = vsel %vm556, %v322, 0
        %v579 = vsel %vm556, %v323, 0
        %v582 = vsel %vm556, %v324, 0
        %v585 = vsel %vm556, %v325, 0
        %v588 = vsel %vm556, %v326, 0
        %v591 = vsel %vm556, %v327, 0
        %v594 = vsel %vm556, %v328, 0
        %v597 = vsel %vm556, %v329, 0
        %v600 = vsel %vm556, %v330, 0
        %v603 = vsel %vm556, %v331, 0
        %v606 = vsel %vm556, %v332, 0
        %v609 = vsel %vm556, %v333, 0
        %v612 = vsel %vm556, %v334, 0
        %v615 = vsel %vm556, %v335, 0
        %v618 = vsel %vm556, %v336, 0
        %v621 = vsel %vm556, %v337, 0
        %v624 = vsel %vm556, %v338, 0
        %v627 = vsel %vm556, %v339, 0
        %v630 = vsel %vm556, %v340, 0
        %v633 = vsel %vm556, %v341, 0
        %v636 = vsel %vm556, %v342, 0
        %v639 = vsel %vm556, %v343, 0
        %v642 = vsel %vm556, %v344, 0
        %v645 = vsel %vm556, %v345, 0
        %v648 = vsel %vm556, %v346, 0
        %v651 = vsel %vm556, %v347, 0
        %653 = vmatprep.subr.mxu0 %v349
        %654 = vmatpush1.msra.mxu0 %v348
        %655 = vmatprep.subr.mxu0 %v353
        %656 = vmatpush1.msra.mxu0 %v352
        %657 = vmatprep.subr.mxu0 %v357
        %658 = vmatpush1.msra.mxu0 %v356
        %659 = vmatprep.subr.mxu0 %v361
        %660 = vmatpush1.msra.mxu0 %v360
        %661 = vmatprep.subr.mxu0 0.0
        %662 = vmatpush1.msra.mxu0 0.0
        %663 = vmatprep.subr.mxu0 0.0
        %664 = vmatpush1.msra.mxu0 0.0
        %665 = vmatprep.subr.mxu0 0.0
        %666 = vmatpush1.msra.mxu0 0.0
        %667 = vmatprep.subr.mxu0 0.0
        %668 = vmatpush1.msra.mxu0 0.0
        %669 = vmatprep.subr.mxu0 0.0
        %670 = vmatpush1.msra.mxu0 0.0
        %671 = vmatprep.subr.mxu0 0.0
        %672 = vmatpush1.msra.mxu0 0.0
        %673 = vmatprep.subr.mxu0 0.0
        %674 = vmatpush1.msra.mxu0 0.0
        %675 = vmatprep.subr.mxu0 0.0
        %676 = vmatpush1.msra.mxu0 0.0
        %677 = vmatprep.subr.mxu0 0.0
        %678 = vmatpush1.msra.mxu0 0.0
        %679 = vmatprep.subr.mxu0 0.0
        %680 = vmatpush1.msra.mxu0 0.0
        %681 = vmatprep.subr.mxu0 0.0
        %682 = vmatpush1.msra.mxu0 0.0
        %683 = vmatprep.subr.mxu0 0.0
        %684 = vmatpush1.msra.mxu0 0.0
        %685 = vmatprep.subr.mxu0 0.0
        %686 = vmatpush1.msra.mxu0 0.0
        %687 = vmatprep.subr.mxu0 0.0
        %688 = vmatpush1.msra.mxu0 0.0
        %689 = vmatprep.subr.mxu0 0.0
        %690 = vmatpush1.msra.mxu0 0.0
        %691 = vmatprep.subr.mxu0 0.0
        %692 = vmatpush1.msra.mxu0 0.0
        %693 = vmatprep.subr.mxu0 0.0
        %694 = vmatpush1.msra.mxu0 0.0
        %695 = vmatprep.subr.mxu0 0.0
        %696 = vmatpush1.msra.mxu0 0.0
        %697 = vmatprep.subr.mxu0 0.0
        %698 = vmatpush1.msra.mxu0 0.0
        %699 = vmatprep.subr.mxu0 0.0
        %700 = vmatpush1.msra.mxu0 0.0
        %701 = vmatprep.subr.mxu0 0.0
        %702 = vmatpush1.msra.mxu0 0.0
        %703 = vmatprep.subr.mxu0 0.0
        %704 = vmatpush1.msra.mxu0 0.0
        %705 = vmatprep.subr.mxu0 0.0
        %706 = vmatpush1.msra.mxu0 0.0
        %707 = vmatprep.subr.mxu0 0.0
        %708 = vmatpush1.msra.mxu0 0.0
        %709 = vmatprep.subr.mxu0 0.0
        %710 = vmatpush1.msra.mxu0 0.0
        %711 = vmatprep.subr.mxu0 0.0
        %712 = vmatpush1.msra.mxu0 0.0
        %713 = vmatprep.subr.mxu0 0.0
        %714 = vmatpush1.msra.mxu0 0.0
        %715 = vmatprep.subr.mxu0 0.0
        %716 = vmatpush1.msra.mxu0 0.0
        %717 = vmatprep.mubr.f32.mxu0 0.0
        %718 = vmatmul.mubr.f32.gmra.mrb[0].mxu0 %v558
        %v719 = vpop.f32.mrb[0].mxu0
        %v720 = vadd.f32 %v399, %v719
        %v721 = vpop.f32.mrb[0].mxu0
        %v722 = vadd.f32 %v399, %v721
        %723 = vmatprep.mubr.f32.mxu0 0.0
        %724 = vmatmul.mubr.f32.gmra.mrb[0].mxu0 %v561
        %v725 = vpop.f32.mrb[0].mxu0
        %v726 = vadd.f32 %v404, %v725
        %v727 = vpop.f32.mrb[0].mxu0
        %v728 = vadd.f32 %v404, %v727
        %729 = vmatprep.mubr.f32.mxu0 0.0
        %730 = vmatmul.mubr.f32.gmra.mrb[0].mxu0 %v564
        %v731 = vpop.f32.mrb[0].mxu0
        %v732 = vadd.f32 %v409, %v731
        %v733 = vpop.f32.mrb[0].mxu0
        %v734 = vadd.f32 %v409, %v733
        %735 = vmatprep.mubr.f32.mxu0 0.0
        %736 = vmatmul.mubr.f32.gmra.mrb[0].mxu0 %v567
        %v737 = vpop.f32.mrb[0].mxu0
        %v738 = vadd.f32 %v414, %v737
        %v739 = vpop.f32.mrb[0].mxu0
        %v740 = vadd.f32 %v414, %v739
        %741 = vmatprep.mubr.f32.mxu0 0.0
        %742 = vmatmul.mubr.f32.gmra.mrb[0].mxu0 %v570
        %v743 = vpop.f32.mrb[0].mxu0
        %v744 = vadd.f32 %v419, %v743
        %v745 = vpop.f32.mrb[0].mxu0
        %v746 = vadd.f32 %v419, %v745
        %747 = vmatprep.mubr.f32.mxu0 0.0
        %748 = vmatmul.mubr.f32.gmra.mrb[0].mxu0 %v573
        %v749 = vpop.f32.mrb[0].mxu0
        %v750 = vadd.f32 %v424, %v749
        %v751 = vpop.f32.mrb[0].mxu0
        %v752 = vadd.f32 %v424, %v751
        %753 = vmatprep.mubr.f32.mxu0 0.0
        %754 = vmatmul.mubr.f32.gmra.mrb[0].mxu0 %v576
        %v755 = vpop.f32.mrb[0].mxu0
        %v756 = vadd.f32 %v429, %v755
        %v757 = vpop.f32.mrb[0].mxu0
        %v758 = vadd.f32 %v429, %v757
        %759 = vmatprep.mubr.f32.mxu0 0.0
        %760 = vmatmul.mubr.f32.gmra.mrb[0].mxu0 %v579
        %v761 = vpop.f32.mrb[0].mxu0
        %v762 = vadd.f32 %v434, %v761
        %v763 = vpop.f32.mrb[0].mxu0
        %v764 = vadd.f32 %v434, %v763
        %765 = vmatprep.mubr.f32.mxu0 0.0
        %766 = vmatmul.mubr.f32.gmra.mrb[0].mxu0 %v582
        %v767 = vpop.f32.mrb[0].mxu0
        %v768 = vadd.f32 %v439, %v767
        %v769 = vpop.f32.mrb[0].mxu0
        %v770 = vadd.f32 %v439, %v769
        %771 = vmatprep.mubr.f32.mxu0 0.0
        %772 = vmatmul.mubr.f32.gmra.mrb[0].mxu0 %v585
        %v773 = vpop.f32.mrb[0].mxu0
        %v774 = vadd.f32 %v444, %v773
        %v775 = vpop.f32.mrb[0].mxu0
        %v776 = vadd.f32 %v444, %v775
        %777 = vmatprep.mubr.f32.mxu0 0.0
        %778 = vmatmul.mubr.f32.gmra.mrb[0].mxu0 %v588
        %v779 = vpop.f32.mrb[0].mxu0
        %v780 = vadd.f32 %v449, %v779
        %v781 = vpop.f32.mrb[0].mxu0
        %v782 = vadd.f32 %v449, %v781
        %783 = vmatprep.mubr.f32.mxu0 0.0
        %784 = vmatmul.mubr.f32.gmra.mrb[0].mxu0 %v591
        %v785 = vpop.f32.mrb[0].mxu0
        %v786 = vadd.f32 %v454, %v785
        %v787 = vpop.f32.mrb[0].mxu0
        %v788 = vadd.f32 %v454, %v787
        %789 = vmatprep.mubr.f32.mxu0 0.0
        %790 = vmatmul.mubr.f32.gmra.mrb[0].mxu0 %v594
        %v791 = vpop.f32.mrb[0].mxu0
        %v792 = vadd.f32 %v459, %v791
        %v793 = vpop.f32.mrb[0].mxu0
        %v794 = vadd.f32 %v459, %v793
        %795 = vmatprep.mubr.f32.mxu0 0.0
        %796 = vmatmul.mubr.f32.gmra.mrb[0].mxu0 %v597
        %v797 = vpop.f32.mrb[0].mxu0
        %v798 = vadd.f32 %v464, %v797
        %v799 = vpop.f32.mrb[0].mxu0
        %v800 = vadd.f32 %v464, %v799
        %801 = vmatprep.mubr.f32.mxu0 0.0
        %802 = vmatmul.mubr.f32.gmra.mrb[0].mxu0 %v600
        %v803 = vpop.f32.mrb[0].mxu0
        %v804 = vadd.f32 %v469, %v803
        %v805 = vpop.f32.mrb[0].mxu0
        %v806 = vadd.f32 %v469, %v805
        %807 = vmatprep.mubr.f32.mxu0 0.0
        %808 = vmatmul.mubr.f32.gmra.mrb[0].mxu0 %v603
        %v809 = vpop.f32.mrb[0].mxu0
        %v810 = vadd.f32 %v474, %v809
        %v811 = vpop.f32.mrb[0].mxu0
        %v812 = vadd.f32 %v474, %v811
        %813 = vmatprep.mubr.f32.mxu0 0.0
        %814 = vmatmul.mubr.f32.gmra.mrb[0].mxu0 %v606
        %v815 = vpop.f32.mrb[0].mxu0
        %v816 = vadd.f32 %v479, %v815
        %v817 = vpop.f32.mrb[0].mxu0
        %v818 = vadd.f32 %v479, %v817
        %819 = vmatprep.mubr.f32.mxu0 0.0
        %820 = vmatmul.mubr.f32.gmra.mrb[0].mxu0 %v609
        %v821 = vpop.f32.mrb[0].mxu0
        %v822 = vadd.f32 %v484, %v821
        %v823 = vpop.f32.mrb[0].mxu0
        %v824 = vadd.f32 %v484, %v823
        %825 = vmatprep.mubr.f32.mxu0 0.0
        %826 = vmatmul.mubr.f32.gmra.mrb[0].mxu0 %v612
        %v827 = vpop.f32.mrb[0].mxu0
        %v828 = vadd.f32 %v489, %v827
        %v829 = vpop.f32.mrb[0].mxu0
        %v830 = vadd.f32 %v489, %v829
        %831 = vmatprep.mubr.f32.mxu0 0.0
        %832 = vmatmul.mubr.f32.gmra.mrb[0].mxu0 %v615
        %v833 = vpop.f32.mrb[0].mxu0
        %v834 = vadd.f32 %v494, %v833
        %v835 = vpop.f32.mrb[0].mxu0
        %v836 = vadd.f32 %v494, %v835
        %837 = vmatprep.mubr.f32.mxu0 0.0
        %838 = vmatmul.mubr.f32.gmra.mrb[0].mxu0 %v618
        %v839 = vpop.f32.mrb[0].mxu0
        %v840 = vadd.f32 %v499, %v839
        %v841 = vpop.f32.mrb[0].mxu0
        %v842 = vadd.f32 %v499, %v841
        %843 = vmatprep.mubr.f32.mxu0 0.0
        %844 = vmatmul.mubr.f32.gmra.mrb[0].mxu0 %v621
        %v845 = vpop.f32.mrb[0].mxu0
        %v846 = vadd.f32 %v504, %v845
        %v847 = vpop.f32.mrb[0].mxu0
        %v848 = vadd.f32 %v504, %v847
        %849 = vmatprep.mubr.f32.mxu0 0.0
        %850 = vmatmul.mubr.f32.gmra.mrb[0].mxu0 %v624
        %v851 = vpop.f32.mrb[0].mxu0
        %v852 = vadd.f32 %v509, %v851
        %v853 = vpop.f32.mrb[0].mxu0
        %v854 = vadd.f32 %v509, %v853
        %855 = vmatprep.mubr.f32.mxu0 0.0
        %856 = vmatmul.mubr.f32.gmra.mrb[0].mxu0 %v627
        %v857 = vpop.f32.mrb[0].mxu0
        %v858 = vadd.f32 %v514, %v857
        %v859 = vpop.f32.mrb[0].mxu0
        %v860 = vadd.f32 %v514, %v859
        %861 = vmatprep.mubr.f32.mxu0 0.0
        %862 = vmatmul.mubr.f32.gmra.mrb[0].mxu0 %v630
        %v863 = vpop.f32.mrb[0].mxu0
        %v864 = vadd.f32 %v519, %v863
        %v865 = vpop.f32.mrb[0].mxu0
        %v866 = vadd.f32 %v519, %v865
        %867 = vmatprep.mubr.f32.mxu0 0.0
        %868 = vmatmul.mubr.f32.gmra.mrb[0].mxu0 %v633
        %v869 = vpop.f32.mrb[0].mxu0
        %v870 = vadd.f32 %v524, %v869
        %v871 = vpop.f32.mrb[0].mxu0
        %v872 = vadd.f32 %v524, %v871
        %873 = vmatprep.mubr.f32.mxu0 0.0
        %874 = vmatmul.mubr.f32.gmra.mrb[0].mxu0 %v636
        %v875 = vpop.f32.mrb[0].mxu0
        %v876 = vadd.f32 %v529, %v875
        %v877 = vpop.f32.mrb[0].mxu0
        %v878 = vadd.f32 %v529, %v877
        %879 = vmatprep.mubr.f32.mxu0 0.0
        %880 = vmatmul.mubr.f32.gmra.mrb[0].mxu0 %v639
        %v881 = vpop.f32.mrb[0].mxu0
        %v882 = vadd.f32 %v534, %v881
        %v883 = vpop.f32.mrb[0].mxu0
        %v884 = vadd.f32 %v534, %v883
        %885 = vmatprep.mubr.f32.mxu0 0.0
        %886 = vmatmul.mubr.f32.gmra.mrb[0].mxu0 %v642
        %v887 = vpop.f32.mrb[0].mxu0
        %v888 = vadd.f32 %v539, %v887
        %v889 = vpop.f32.mrb[0].mxu0
        %v890 = vadd.f32 %v539, %v889
        %891 = vmatprep.mubr.f32.mxu0 0.0
        %892 = vmatmul.mubr.f32.gmra.mrb[0].mxu0 %v645
        %v893 = vpop.f32.mrb[0].mxu0
        %v894 = vadd.f32 %v544, %v893
        %v895 = vpop.f32.mrb[0].mxu0
        %v896 = vadd.f32 %v544, %v895
        %897 = vmatprep.mubr.f32.mxu0 0.0
        %898 = vmatmul.mubr.f32.gmra.mrb[0].mxu0 %v648
        %v899 = vpop.f32.mrb[0].mxu0
        %v900 = vadd.f32 %v549, %v899
        %v901 = vpop.f32.mrb[0].mxu0
        %v902 = vadd.f32 %v549, %v901
        %903 = vmatprep.mubr.f32.mxu0 0.0
        %904 = vmatmul.mubr.f32.gmra.mrb[0].mxu0 %v651
        %v905 = vpop.f32.mrb[0].mxu0
        %v906 = vadd.f32 %v554, %v905
        %v907 = vpop.f32.mrb[0].mxu0
        %v908 = vadd.f32 %v554, %v907
        %909 = vdwg.mxu0
        %910 = vmatprep.subr.mxu0 %v351
        %911 = vmatpush1.msra.mxu0 %v350
        %912 = vmatprep.subr.mxu0 %v355
        %913 = vmatpush1.msra.mxu0 %v354
        %914 = vmatprep.subr.mxu0 %v359
        %915 = vmatpush1.msra.mxu0 %v358
        %916 = vmatprep.subr.mxu0 %v363
        %917 = vmatpush1.msra.mxu0 %v362
        %918 = vmatprep.subr.mxu0 0.0
        %919 = vmatpush1.msra.mxu0 0.0
        %920 = vmatprep.subr.mxu0 0.0
        %921 = vmatpush1.msra.mxu0 0.0
        %922 = vmatprep.subr.mxu0 0.0
        %923 = vmatpush1.msra.mxu0 0.0
        %924 = vmatprep.subr.mxu0 0.0
        %925 = vmatpush1.msra.mxu0 0.0
        %926 = vmatprep.subr.mxu0 0.0
        %927 = vmatpush1.msra.mxu0 0.0
        %928 = vmatprep.subr.mxu0 0.0
        %929 = vmatpush1.msra.mxu0 0.0
        %930 = vmatprep.subr.mxu0 0.0
        %931 = vmatpush1.msra.mxu0 0.0
        %932 = vmatprep.subr.mxu0 0.0
        %933 = vmatpush1.msra.mxu0 0.0
        %934 = vmatprep.subr.mxu0 0.0
        %935 = vmatpush1.msra.mxu0 0.0
        %936 = vmatprep.subr.mxu0 0.0
        %937 = vmatpush1.msra.mxu0 0.0
        %938 = vmatprep.subr.mxu0 0.0
        %939 = vmatpush1.msra.mxu0 0.0
        %940 = vmatprep.subr.mxu0 0.0
        %941 = vmatpush1.msra.mxu0 0.0
        %942 = vmatprep.subr.mxu0 0.0
        %943 = vmatpush1.msra.mxu0 0.0
        %944 = vmatprep.subr.mxu0 0.0
        %945 = vmatpush1.msra.mxu0 0.0
        %946 = vmatprep.subr.mxu0 0.0
        %947 = vmatpush1.msra.mxu0 0.0
        %948 = vmatprep.subr.mxu0 0.0
        %949 = vmatpush1.msra.mxu0 0.0
        %950 = vmatprep.subr.mxu0 0.0
        %951 = vmatpush1.msra.mxu0 0.0
        %952 = vmatprep.subr.mxu0 0.0
        %953 = vmatpush1.msra.mxu0 0.0
        %954 = vmatprep.subr.mxu0 0.0
        %955 = vmatpush1.msra.mxu0 0.0
        %956 = vmatprep.subr.mxu0 0.0
        %957 = vmatpush1.msra.mxu0 0.0
        %958 = vmatprep.subr.mxu0 0.0
        %959 = vmatpush1.msra.mxu0 0.0
        %960 = vmatprep.subr.mxu0 0.0
        %961 = vmatpush1.msra.mxu0 0.0
        %962 = vmatprep.subr.mxu0 0.0
        %963 = vmatpush1.msra.mxu0 0.0
        %964 = vmatprep.subr.mxu0 0.0
        %965 = vmatpush1.msra.mxu0 0.0
        %966 = vmatprep.subr.mxu0 0.0
        %967 = vmatpush1.msra.mxu0 0.0
        %968 = vmatprep.subr.mxu0 0.0
        %969 = vmatpush1.msra.mxu0 0.0
        %970 = vmatprep.subr.mxu0 0.0
        %971 = vmatpush1.msra.mxu0 0.0
        %972 = vmatprep.subr.mxu0 0.0
        %973 = vmatpush1.msra.mxu0 0.0
        %974 = vmatprep.mubr.f32.mxu0 0.0
        %975 = vmatmul.mubr.f32.gmra.mrb[0].mxu0 %v558
        %v976 = vpop.f32.mrb[0].mxu0
        %v977 = vadd.f32 %v399, %v976
        %v978 = vpop.f32.mrb[0].mxu0
        %v979 = vadd.f32 %v399, %v978
        %980 = vmatprep.mubr.f32.mxu0 0.0
        %981 = vmatmul.mubr.f32.gmra.mrb[0].mxu0 %v561
        %v982 = vpop.f32.mrb[0].mxu0
        %v983 = vadd.f32 %v404, %v982
        %v984 = vpop.f32.mrb[0].mxu0
        %v985 = vadd.f32 %v404, %v984
        %986 = vmatprep.mubr.f32.mxu0 0.0
        %987 = vmatmul.mubr.f32.gmra.mrb[0].mxu0 %v564
        %v988 = vpop.f32.mrb[0].mxu0
        %v989 = vadd.f32 %v409, %v988
        %v990 = vpop.f32.mrb[0].mxu0
        %v991 = vadd.f32 %v409, %v990
        %992 = vmatprep.mubr.f32.mxu0 0.0
        %993 = vmatmul.mubr.f32.gmra.mrb[0].mxu0 %v567
        %v994 = vpop.f32.mrb[0].mxu0
        %v995 = vadd.f32 %v414, %v994
        %v996 = vpop.f32.mrb[0].mxu0
        %v997 = vadd.f32 %v414, %v996
        %998 = vmatprep.mubr.f32.mxu0 0.0
        %999 = vmatmul.mubr.f32.gmra.mrb[0].mxu0 %v570
        %v1000 = vpop.f32.mrb[0].mxu0
        %v1001 = vadd.f32 %v419, %v1000
        %v1002 = vpop.f32.mrb[0].mxu0
        %v1003 = vadd.f32 %v419, %v1002
        %1004 = vmatprep.mubr.f32.mxu0 0.0
        %1005 = vmatmul.mubr.f32.gmra.mrb[0].mxu0 %v573
        %v1006 = vpop.f32.mrb[0].mxu0
        %v1007 = vadd.f32 %v424, %v1006
        %v1008 = vpop.f32.mrb[0].mxu0
        %v1009 = vadd.f32 %v424, %v1008
        %1010 = vmatprep.mubr.f32.mxu0 0.0
        %1011 = vmatmul.mubr.f32.gmra.mrb[0].mxu0 %v576
        %v1012 = vpop.f32.mrb[0].mxu0
        %v1013 = vadd.f32 %v429, %v1012
        %v1014 = vpop.f32.mrb[0].mxu0
        %v1015 = vadd.f32 %v429, %v1014
        %1016 = vmatprep.mubr.f32.mxu0 0.0
        %1017 = vmatmul.mubr.f32.gmra.mrb[0].mxu0 %v579
        %v1018 = vpop.f32.mrb[0].mxu0
        %v1019 = vadd.f32 %v434, %v1018
        %v1020 = vpop.f32.mrb[0].mxu0
        %v1021 = vadd.f32 %v434, %v1020
        %1022 = vmatprep.mubr.f32.mxu0 0.0
        %1023 = vmatmul.mubr.f32.gmra.mrb[0].mxu0 %v582
        %v1024 = vpop.f32.mrb[0].mxu0
        %v1025 = vadd.f32 %v439, %v1024
        %v1026 = vpop.f32.mrb[0].mxu0
        %v1027 = vadd.f32 %v439, %v1026
        %1028 = vmatprep.mubr.f32.mxu0 0.0
        %1029 = vmatmul.mubr.f32.gmra.mrb[0].mxu0 %v585
        %v1030 = vpop.f32.mrb[0].mxu0
        %v1031 = vadd.f32 %v444, %v1030
        %v1032 = vpop.f32.mrb[0].mxu0
        %v1033 = vadd.f32 %v444, %v1032
        %1034 = vmatprep.mubr.f32.mxu0 0.0
        %1035 = vmatmul.mubr.f32.gmra.mrb[0].mxu0 %v588
        %v1036 = vpop.f32.mrb[0].mxu0
        %v1037 = vadd.f32 %v449, %v1036
        %v1038 = vpop.f32.mrb[0].mxu0
        %v1039 = vadd.f32 %v449, %v1038
        %1040 = vmatprep.mubr.f32.mxu0 0.0
        %1041 = vmatmul.mubr.f32.gmra.mrb[0].mxu0 %v591
        %v1042 = vpop.f32.mrb[0].mxu0
        %v1043 = vadd.f32 %v454, %v1042
        %v1044 = vpop.f32.mrb[0].mxu0
        %v1045 = vadd.f32 %v454, %v1044
        %1046 = vmatprep.mubr.f32.mxu0 0.0
        %1047 = vmatmul.mubr.f32.gmra.mrb[0].mxu0 %v594
        %v1048 = vpop.f32.mrb[0].mxu0
        %v1049 = vadd.f32 %v459, %v1048
        %v1050 = vpop.f32.mrb[0].mxu0
        %v1051 = vadd.f32 %v459, %v1050
        %1052 = vmatprep.mubr.f32.mxu0 0.0
        %1053 = vmatmul.mubr.f32.gmra.mrb[0].mxu0 %v597
        %v1054 = vpop.f32.mrb[0].mxu0
        %v1055 = vadd.f32 %v464, %v1054
        %v1056 = vpop.f32.mrb[0].mxu0
        %v1057 = vadd.f32 %v464, %v1056
        %1058 = vmatprep.mubr.f32.mxu0 0.0
        %1059 = vmatmul.mubr.f32.gmra.mrb[0].mxu0 %v600
        %v1060 = vpop.f32.mrb[0].mxu0
        %v1061 = vadd.f32 %v469, %v1060
        %v1062 = vpop.f32.mrb[0].mxu0
        %v1063 = vadd.f32 %v469, %v1062
        %1064 = vmatprep.mubr.f32.mxu0 0.0
        %1065 = vmatmul.mubr.f32.gmra.mrb[0].mxu0 %v603
        %v1066 = vpop.f32.mrb[0].mxu0
        %v1067 = vadd.f32 %v474, %v1066
        %v1068 = vpop.f32.mrb[0].mxu0
        %v1069 = vadd.f32 %v474, %v1068
        %1070 = vmatprep.mubr.f32.mxu0 0.0
        %1071 = vmatmul.mubr.f32.gmra.mrb[0].mxu0 %v606
        %v1072 = vpop.f32.mrb[0].mxu0
        %v1073 = vadd.f32 %v479, %v1072
        %v1074 = vpop.f32.mrb[0].mxu0
        %v1075 = vadd.f32 %v479, %v1074
        %1076 = vmatprep.mubr.f32.mxu0 0.0
        %1077 = vmatmul.mubr.f32.gmra.mrb[0].mxu0 %v609
        %v1078 = vpop.f32.mrb[0].mxu0
        %v1079 = vadd.f32 %v484, %v1078
        %v1080 = vpop.f32.mrb[0].mxu0
        %v1081 = vadd.f32 %v484, %v1080
        %1082 = vmatprep.mubr.f32.mxu0 0.0
        %1083 = vmatmul.mubr.f32.gmra.mrb[0].mxu0 %v612
        %v1084 = vpop.f32.mrb[0].mxu0
        %v1085 = vadd.f32 %v489, %v1084
        %v1086 = vpop.f32.mrb[0].mxu0
        %v1087 = vadd.f32 %v489, %v1086
        %1088 = vmatprep.mubr.f32.mxu0 0.0
        %1089 = vmatmul.mubr.f32.gmra.mrb[0].mxu0 %v615
        %v1090 = vpop.f32.mrb[0].mxu0
        %v1091 = vadd.f32 %v494, %v1090
        %v1092 = vpop.f32.mrb[0].mxu0
        %v1093 = vadd.f32 %v494, %v1092
        %1094 = vmatprep.mubr.f32.mxu0 0.0
        %1095 = vmatmul.mubr.f32.gmra.mrb[0].mxu0 %v618
        %v1096 = vpop.f32.mrb[0].mxu0
        %v1097 = vadd.f32 %v499, %v1096
        %v1098 = vpop.f32.mrb[0].mxu0
        %v1099 = vadd.f32 %v499, %v1098
        %1100 = vmatprep.mubr.f32.mxu0 0.0
        %1101 = vmatmul.mubr.f32.gmra.mrb[0].mxu0 %v621
        %v1102 = vpop.f32.mrb[0].mxu0
        %v1103 = vadd.f32 %v504, %v1102
        %v1104 = vpop.f32.mrb[0].mxu0
        %v1105 = vadd.f32 %v504, %v1104
        %1106 = vmatprep.mubr.f32.mxu0 0.0
        %1107 = vmatmul.mubr.f32.gmra.mrb[0].mxu0 %v624
        %v1108 = vpop.f32.mrb[0].mxu0
        %v1109 = vadd.f32 %v509, %v1108
        %v1110 = vpop.f32.mrb[0].mxu0
        %v1111 = vadd.f32 %v509, %v1110
        %1112 = vmatprep.mubr.f32.mxu0 0.0
        %1113 = vmatmul.mubr.f32.gmra.mrb[0].mxu0 %v627
        %v1114 = vpop.f32.mrb[0].mxu0
        %v1115 = vadd.f32 %v514, %v1114
        %v1116 = vpop.f32.mrb[0].mxu0
        %v1117 = vadd.f32 %v514, %v1116
        %1118 = vmatprep.mubr.f32.mxu0 0.0
        %1119 = vmatmul.mubr.f32.gmra.mrb[0].mxu0 %v630
        %v1120 = vpop.f32.mrb[0].mxu0
        %v1121 = vadd.f32 %v519, %v1120
        %v1122 = vpop.f32.mrb[0].mxu0
        %v1123 = vadd.f32 %v519, %v1122
        %1124 = vmatprep.mubr.f32.mxu0 0.0
        %1125 = vmatmul.mubr.f32.gmra.mrb[0].mxu0 %v633
        %v1126 = vpop.f32.mrb[0].mxu0
        %v1127 = vadd.f32 %v524, %v1126
        %v1128 = vpop.f32.mrb[0].mxu0
        %v1129 = vadd.f32 %v524, %v1128
        %1130 = vmatprep.mubr.f32.mxu0 0.0
        %1131 = vmatmul.mubr.f32.gmra.mrb[0].mxu0 %v636
        %v1132 = vpop.f32.mrb[0].mxu0
        %v1133 = vadd.f32 %v529, %v1132
        %v1134 = vpop.f32.mrb[0].mxu0
        %v1135 = vadd.f32 %v529, %v1134
        %1136 = vmatprep.mubr.f32.mxu0 0.0
        %1137 = vmatmul.mubr.f32.gmra.mrb[0].mxu0 %v639
        %v1138 = vpop.f32.mrb[0].mxu0
        %v1139 = vadd.f32 %v534, %v1138
        %v1140 = vpop.f32.mrb[0].mxu0
        %v1141 = vadd.f32 %v534, %v1140
        %1142 = vmatprep.mubr.f32.mxu0 0.0
        %1143 = vmatmul.mubr.f32.gmra.mrb[0].mxu0 %v642
        %v1144 = vpop.f32.mrb[0].mxu0
        %v1145 = vadd.f32 %v539, %v1144
        %v1146 = vpop.f32.mrb[0].mxu0
        %v1147 = vadd.f32 %v539, %v1146
        %1148 = vmatprep.mubr.f32.mxu0 0.0
        %1149 = vmatmul.mubr.f32.gmra.mrb[0].mxu0 %v645
        %v1150 = vpop.f32.mrb[0].mxu0
        %v1151 = vadd.f32 %v544, %v1150
        %v1152 = vpop.f32.mrb[0].mxu0
        %v1153 = vadd.f32 %v544, %v1152
        %1154 = vmatprep.mubr.f32.mxu0 0.0
        %1155 = vmatmul.mubr.f32.gmra.mrb[0].mxu0 %v648
        %v1156 = vpop.f32.mrb[0].mxu0
        %v1157 = vadd.f32 %v549, %v1156
        %v1158 = vpop.f32.mrb[0].mxu0
        %v1159 = vadd.f32 %v549, %v1158
        %1160 = vmatprep.mubr.f32.mxu0 0.0
        %1161 = vmatmul.mubr.f32.gmra.mrb[0].mxu0 %v651
        %v1162 = vpop.f32.mrb[0].mxu0
        %v1163 = vadd.f32 %v554, %v1162
        %v1164 = vpop.f32.mrb[0].mxu0
        %v1165 = vadd.f32 %v554, %v1164
        %1166 = vdwg.mxu0
        %v1167 = vld [vmem:[%s260] sm:$0xf]
        %v1169 = vlaneseq
        %v1170 = vshrl.u32 %v1169, 7
        %v1171 = vsub.s32 0, %v1170
        %v1172 = vrot.slane %v1167, %v1171
        %v1173 = vlaneseq
        %v1174 = vshrl.u32 %v1173, 7
        %v1175 = vsub.s32 1, %v1174
        %v1176 = vrot.slane %v1167, %v1175
        %v1177 = vlaneseq
        %v1178 = vshrl.u32 %v1177, 7
        %v1179 = vsub.s32 2, %v1178
        %v1180 = vrot.slane %v1167, %v1179
        %v1181 = vlaneseq
        %v1182 = vshrl.u32 %v1181, 7
        %v1183 = vsub.s32 3, %v1182
        %v1184 = vrot.slane %v1167, %v1183
        %v1189 = vadd.f32 %v720, %v1172
        %v1190 = vadd.f32 %v722, %v1176
        %v1191 = vadd.f32 %v977, %v1180
        %v1192 = vadd.f32 %v979, %v1184
        %v1193 = vadd.f32 %v726, %v1172
        %v1194 = vadd.f32 %v728, %v1176
        %v1195 = vadd.f32 %v983, %v1180
        %v1196 = vadd.f32 %v985, %v1184
        %v1197 = vadd.f32 %v732, %v1172
        %v1198 = vadd.f32 %v734, %v1176
        %v1199 = vadd.f32 %v989, %v1180
        %v1200 = vadd.f32 %v991, %v1184
        %v1201 = vadd.f32 %v738, %v1172
        %v1202 = vadd.f32 %v740, %v1176
        %v1203 = vadd.f32 %v995, %v1180
        %v1204 = vadd.f32 %v997, %v1184
        %v1205 = vadd.f32 %v744, %v1172
        %v1206 = vadd.f32 %v746, %v1176
        %v1207 = vadd.f32 %v1001, %v1180
        %v1208 = vadd.f32 %v1003, %v1184
        %v1209 = vadd.f32 %v750, %v1172
        %v1210 = vadd.f32 %v752, %v1176
        %v1211 = vadd.f32 %v1007, %v1180
        %v1212 = vadd.f32 %v1009, %v1184
        %v1213 = vadd.f32 %v756, %v1172
        %v1214 = vadd.f32 %v758, %v1176
        %v1215 = vadd.f32 %v1013, %v1180
        %v1216 = vadd.f32 %v1015, %v1184
        %v1217 = vadd.f32 %v762, %v1172
        %v1218 = vadd.f32 %v764, %v1176
        %v1219 = vadd.f32 %v1019, %v1180
        %v1220 = vadd.f32 %v1021, %v1184
        %v1221 = vadd.f32 %v768, %v1172
        %v1222 = vadd.f32 %v770, %v1176
        %v1223 = vadd.f32 %v1025, %v1180
        %v1224 = vadd.f32 %v1027, %v1184
        %v1225 = vadd.f32 %v774, %v1172
        %v1226 = vadd.f32 %v776, %v1176
        %v1227 = vadd.f32 %v1031, %v1180
        %v1228 = vadd.f32 %v1033, %v1184
        %v1229 = vadd.f32 %v780, %v1172
        %v1230 = vadd.f32 %v782, %v1176
        %v1231 = vadd.f32 %v1037, %v1180
        %v1232 = vadd.f32 %v1039, %v1184
        %v1233 = vadd.f32 %v786, %v1172
        %v1234 = vadd.f32 %v788, %v1176
        %v1235 = vadd.f32 %v1043, %v1180
        %v1236 = vadd.f32 %v1045, %v1184
        %v1237 = vadd.f32 %v792, %v1172
        %v1238 = vadd.f32 %v794, %v1176
        %v1239 = vadd.f32 %v1049, %v1180
        %v1240 = vadd.f32 %v1051, %v1184
        %v1241 = vadd.f32 %v798, %v1172
        %v1242 = vadd.f32 %v800, %v1176
        %v1243 = vadd.f32 %v1055, %v1180
        %v1244 = vadd.f32 %v1057, %v1184
        %v1245 = vadd.f32 %v804, %v1172
        %v1246 = vadd.f32 %v806, %v1176
        %v1247 = vadd.f32 %v1061, %v1180
        %v1248 = vadd.f32 %v1063, %v1184
        %v1249 = vadd.f32 %v810, %v1172
        %v1250 = vadd.f32 %v812, %v1176
        %v1251 = vadd.f32 %v1067, %v1180
        %v1252 = vadd.f32 %v1069, %v1184
        %v1253 = vadd.f32 %v816, %v1172
        %v1254 = vadd.f32 %v818, %v1176
        %v1255 = vadd.f32 %v1073, %v1180
        %v1256 = vadd.f32 %v1075, %v1184
        %v1257 = vadd.f32 %v822, %v1172
        %v1258 = vadd.f32 %v824, %v1176
        %v1259 = vadd.f32 %v1079, %v1180
        %v1260 = vadd.f32 %v1081, %v1184
        %v1261 = vadd.f32 %v828, %v1172
        %v1262 = vadd.f32 %v830, %v1176
        %v1263 = vadd.f32 %v1085, %v1180
        %v1264 = vadd.f32 %v1087, %v1184
        %v1265 = vadd.f32 %v834, %v1172
        %v1266 = vadd.f32 %v836, %v1176
        %v1267 = vadd.f32 %v1091, %v1180
        %v1268 = vadd.f32 %v1093, %v1184
        %v1269 = vadd.f32 %v840, %v1172
        %v1270 = vadd.f32 %v842, %v1176
        %v1271 = vadd.f32 %v1097, %v1180
        %v1272 = vadd.f32 %v1099, %v1184
        %v1273 = vadd.f32 %v846, %v1172
        %v1274 = vadd.f32 %v848, %v1176
        %v1275 = vadd.f32 %v1103, %v1180
        %v1276 = vadd.f32 %v1105, %v1184
        %v1277 = vadd.f32 %v852, %v1172
        %v1278 = vadd.f32 %v854, %v1176
        %v1279 = vadd.f32 %v1109, %v1180
        %v1280 = vadd.f32 %v1111, %v1184
        %v1281 = vadd.f32 %v858, %v1172
        %v1282 = vadd.f32 %v860, %v1176
        %v1283 = vadd.f32 %v1115, %v1180
        %v1284 = vadd.f32 %v1117, %v1184
        %v1285 = vadd.f32 %v864, %v1172
        %v1286 = vadd.f32 %v866, %v1176
        %v1287 = vadd.f32 %v1121, %v1180
        %v1288 = vadd.f32 %v1123, %v1184
        %v1289 = vadd.f32 %v870, %v1172
        %v1290 = vadd.f32 %v872, %v1176
        %v1291 = vadd.f32 %v1127, %v1180
        %v1292 = vadd.f32 %v1129, %v1184
        %v1293 = vadd.f32 %v876, %v1172
        %v1294 = vadd.f32 %v878, %v1176
        %v1295 = vadd.f32 %v1133, %v1180
        %v1296 = vadd.f32 %v1135, %v1184
        %v1297 = vadd.f32 %v882, %v1172
        %v1298 = vadd.f32 %v884, %v1176
        %v1299 = vadd.f32 %v1139, %v1180
        %v1300 = vadd.f32 %v1141, %v1184
        %v1301 = vadd.f32 %v888, %v1172
        %v1302 = vadd.f32 %v890, %v1176
        %v1303 = vadd.f32 %v1145, %v1180
        %v1304 = vadd.f32 %v1147, %v1184
        %v1305 = vadd.f32 %v894, %v1172
        %v1306 = vadd.f32 %v896, %v1176
        %v1307 = vadd.f32 %v1151, %v1180
        %v1308 = vadd.f32 %v1153, %v1184
        %v1309 = vadd.f32 %v900, %v1172
        %v1310 = vadd.f32 %v902, %v1176
        %v1311 = vadd.f32 %v1157, %v1180
        %v1312 = vadd.f32 %v1159, %v1184
        %v1313 = vadd.f32 %v906, %v1172
        %v1314 = vadd.f32 %v908, %v1176
        %v1315 = vadd.f32 %v1163, %v1180
        %v1316 = vadd.f32 %v1165, %v1184
        %v1317 = vmin.f32 %v1189, 0.0
        %v1318 = vmin.f32 %v1190, 0.0
        %v1319 = vmin.f32 %v1191, 0.0
        %v1320 = vmin.f32 %v1192, 0.0
        %v1321 = vmin.f32 %v1193, 0.0
        %v1322 = vmin.f32 %v1194, 0.0
        %v1323 = vmin.f32 %v1195, 0.0
        %v1324 = vmin.f32 %v1196, 0.0
        %v1325 = vmin.f32 %v1197, 0.0
        %v1326 = vmin.f32 %v1198, 0.0
        %v1327 = vmin.f32 %v1199, 0.0
        %v1328 = vmin.f32 %v1200, 0.0
        %v1329 = vmin.f32 %v1201, 0.0
        %v1330 = vmin.f32 %v1202, 0.0
        %v1331 = vmin.f32 %v1203, 0.0
        %v1332 = vmin.f32 %v1204, 0.0
        %v1333 = vmin.f32 %v1205, 0.0
        %v1334 = vmin.f32 %v1206, 0.0
        %v1335 = vmin.f32 %v1207, 0.0
        %v1336 = vmin.f32 %v1208, 0.0
        %v1337 = vmin.f32 %v1209, 0.0
        %v1338 = vmin.f32 %v1210, 0.0
        %v1339 = vmin.f32 %v1211, 0.0
        %v1340 = vmin.f32 %v1212, 0.0
        %v1341 = vmin.f32 %v1213, 0.0
        %v1342 = vmin.f32 %v1214, 0.0
        %v1343 = vmin.f32 %v1215, 0.0
        %v1344 = vmin.f32 %v1216, 0.0
        %v1345 = vmin.f32 %v1217, 0.0
        %v1346 = vmin.f32 %v1218, 0.0
        %v1347 = vmin.f32 %v1219, 0.0
        %v1348 = vmin.f32 %v1220, 0.0
        %v1349 = vmin.f32 %v1221, 0.0
        %v1350 = vmin.f32 %v1222, 0.0
        %v1351 = vmin.f32 %v1223, 0.0
        %v1352 = vmin.f32 %v1224, 0.0
        %v1353 = vmin.f32 %v1225, 0.0
        %v1354 = vmin.f32 %v1226, 0.0
        %v1355 = vmin.f32 %v1227, 0.0
        %v1356 = vmin.f32 %v1228, 0.0
        %v1357 = vmin.f32 %v1229, 0.0
        %v1358 = vmin.f32 %v1230, 0.0
        %v1359 = vmin.f32 %v1231, 0.0
        %v1360 = vmin.f32 %v1232, 0.0
        %v1361 = vmin.f32 %v1233, 0.0
        %v1362 = vmin.f32 %v1234, 0.0
        %v1363 = vmin.f32 %v1235, 0.0
        %v1364 = vmin.f32 %v1236, 0.0
        %v1365 = vmin.f32 %v1237, 0.0
        %v1366 = vmin.f32 %v1238, 0.0
        %v1367 = vmin.f32 %v1239, 0.0
        %v1368 = vmin.f32 %v1240, 0.0
        %v1369 = vmin.f32 %v1241, 0.0
        %v1370 = vmin.f32 %v1242, 0.0
        %v1371 = vmin.f32 %v1243, 0.0
        %v1372 = vmin.f32 %v1244, 0.0
        %v1373 = vmin.f32 %v1245, 0.0
        %v1374 = vmin.f32 %v1246, 0.0
        %v1375 = vmin.f32 %v1247, 0.0
        %v1376 = vmin.f32 %v1248, 0.0
        %v1377 = vmin.f32 %v1249, 0.0
        %v1378 = vmin.f32 %v1250, 0.0
        %v1379 = vmin.f32 %v1251, 0.0
        %v1380 = vmin.f32 %v1252, 0.0
        %v1381 = vmin.f32 %v1253, 0.0
        %v1382 = vmin.f32 %v1254, 0.0
        %v1383 = vmin.f32 %v1255, 0.0
        %v1384 = vmin.f32 %v1256, 0.0
        %v1385 = vmin.f32 %v1257, 0.0
        %v1386 = vmin.f32 %v1258, 0.0
        %v1387 = vmin.f32 %v1259, 0.0
        %v1388 = vmin.f32 %v1260, 0.0
        %v1389 = vmin.f32 %v1261, 0.0
        %v1390 = vmin.f32 %v1262, 0.0
        %v1391 = vmin.f32 %v1263, 0.0
        %v1392 = vmin.f32 %v1264, 0.0
        %v1393 = vmin.f32 %v1265, 0.0
        %v1394 = vmin.f32 %v1266, 0.0
        %v1395 = vmin.f32 %v1267, 0.0
        %v1396 = vmin.f32 %v1268, 0.0
        %v1397 = vmin.f32 %v1269, 0.0
        %v1398 = vmin.f32 %v1270, 0.0
        %v1399 = vmin.f32 %v1271, 0.0
        %v1400 = vmin.f32 %v1272, 0.0
        %v1401 = vmin.f32 %v1273, 0.0
        %v1402 = vmin.f32 %v1274, 0.0
        %v1403 = vmin.f32 %v1275, 0.0
        %v1404 = vmin.f32 %v1276, 0.0
        %v1405 = vmin.f32 %v1277, 0.0
        %v1406 = vmin.f32 %v1278, 0.0
        %v1407 = vmin.f32 %v1279, 0.0
        %v1408 = vmin.f32 %v1280, 0.0
        %v1409 = vmin.f32 %v1281, 0.0
        %v1410 = vmin.f32 %v1282, 0.0
        %v1411 = vmin.f32 %v1283, 0.0
        %v1412 = vmin.f32 %v1284, 0.0
        %v1413 = vmin.f32 %v1285, 0.0
        %v1414 = vmin.f32 %v1286, 0.0
        %v1415 = vmin.f32 %v1287, 0.0
        %v1416 = vmin.f32 %v1288, 0.0
        %v1417 = vmin.f32 %v1289, 0.0
        %v1418 = vmin.f32 %v1290, 0.0
        %v1419 = vmin.f32 %v1291, 0.0
        %v1420 = vmin.f32 %v1292, 0.0
        %v1421 = vmin.f32 %v1293, 0.0
        %v1422 = vmin.f32 %v1294, 0.0
        %v1423 = vmin.f32 %v1295, 0.0
        %v1424 = vmin.f32 %v1296, 0.0
        %v1425 = vmin.f32 %v1297, 0.0
        %v1426 = vmin.f32 %v1298, 0.0
        %v1427 = vmin.f32 %v1299, 0.0
        %v1428 = vmin.f32 %v1300, 0.0
        %v1429 = vmin.f32 %v1301, 0.0
        %v1430 = vmin.f32 %v1302, 0.0
        %v1431 = vmin.f32 %v1303, 0.0
        %v1432 = vmin.f32 %v1304, 0.0
        %v1433 = vmin.f32 %v1305, 0.0
        %v1434 = vmin.f32 %v1306, 0.0
        %v1435 = vmin.f32 %v1307, 0.0
        %v1436 = vmin.f32 %v1308, 0.0
        %v1437 = vmin.f32 %v1309, 0.0
        %v1438 = vmin.f32 %v1310, 0.0
        %v1439 = vmin.f32 %v1311, 0.0
        %v1440 = vmin.f32 %v1312, 0.0
        %v1441 = vmin.f32 %v1313, 0.0
        %v1442 = vmin.f32 %v1314, 0.0
        %v1443 = vmin.f32 %v1315, 0.0
        %v1444 = vmin.f32 %v1316, 0.0
        %v1445 = vmul.f32 %v1317, 1.442695
        %v1446 = vpow.pop %v1445
        %v1447 = vmul.f32 %v1318, 1.442695
        %v1448 = vpow.pop %v1447
        %v1449 = vmul.f32 %v1319, 1.442695
        %v1450 = vpow.pop %v1449
        %v1451 = vmul.f32 %v1320, 1.442695
        %v1452 = vpow.pop %v1451
        %v1453 = vmul.f32 %v1321, 1.442695
        %v1454 = vpow.pop %v1453
        %v1455 = vmul.f32 %v1322, 1.442695
        %v1456 = vpow.pop %v1455
        %v1457 = vmul.f32 %v1323, 1.442695
        %v1458 = vpow.pop %v1457
        %v1459 = vmul.f32 %v1324, 1.442695
        %v1460 = vpow.pop %v1459
        %v1461 = vmul.f32 %v1325, 1.442695
        %v1462 = vpow.pop %v1461
        %v1463 = vmul.f32 %v1326, 1.442695
        %v1464 = vpow.pop %v1463
        %v1465 = vmul.f32 %v1327, 1.442695
        %v1466 = vpow.pop %v1465
        %v1467 = vmul.f32 %v1328, 1.442695
        %v1468 = vpow.pop %v1467
        %v1469 = vmul.f32 %v1329, 1.442695
        %v1470 = vpow.pop %v1469
        %v1471 = vmul.f32 %v1330, 1.442695
        %v1472 = vpow.pop %v1471
        %v1473 = vmul.f32 %v1331, 1.442695
        %v1474 = vpow.pop %v1473
        %v1475 = vmul.f32 %v1332, 1.442695
        %v1476 = vpow.pop %v1475
        %v1477 = vmul.f32 %v1333, 1.442695
        %v1478 = vpow.pop %v1477
        %v1479 = vmul.f32 %v1334, 1.442695
        %v1480 = vpow.pop %v1479
        %v1481 = vmul.f32 %v1335, 1.442695
        %v1482 = vpow.pop %v1481
        %v1483 = vmul.f32 %v1336, 1.442695
        %v1484 = vpow.pop %v1483
        %v1485 = vmul.f32 %v1337, 1.442695
        %v1486 = vpow.pop %v1485
        %v1487 = vmul.f32 %v1338, 1.442695
        %v1488 = vpow.pop %v1487
        %v1489 = vmul.f32 %v1339, 1.442695
        %v1490 = vpow.pop %v1489
        %v1491 = vmul.f32 %v1340, 1.442695
        %v1492 = vpow.pop %v1491
        %v1493 = vmul.f32 %v1341, 1.442695
        %v1494 = vpow.pop %v1493
        %v1495 = vmul.f32 %v1342, 1.442695
        %v1496 = vpow.pop %v1495
        %v1497 = vmul.f32 %v1343, 1.442695
        %v1498 = vpow.pop %v1497
        %v1499 = vmul.f32 %v1344, 1.442695
        %v1500 = vpow.pop %v1499
        %v1501 = vmul.f32 %v1345, 1.442695
        %v1502 = vpow.pop %v1501
        %v1503 = vmul.f32 %v1346, 1.442695
        %v1504 = vpow.pop %v1503
        %v1505 = vmul.f32 %v1347, 1.442695
        %v1506 = vpow.pop %v1505
        %v1507 = vmul.f32 %v1348, 1.442695
        %v1508 = vpow.pop %v1507
        %v1509 = vmul.f32 %v1349, 1.442695
        %v1510 = vpow.pop %v1509
        %v1511 = vmul.f32 %v1350, 1.442695
        %v1512 = vpow.pop %v1511
        %v1513 = vmul.f32 %v1351, 1.442695
        %v1514 = vpow.pop %v1513
        %v1515 = vmul.f32 %v1352, 1.442695
        %v1516 = vpow.pop %v1515
        %v1517 = vmul.f32 %v1353, 1.442695
        %v1518 = vpow.pop %v1517
        %v1519 = vmul.f32 %v1354, 1.442695
        %v1520 = vpow.pop %v1519
        %v1521 = vmul.f32 %v1355, 1.442695
        %v1522 = vpow.pop %v1521
        %v1523 = vmul.f32 %v1356, 1.442695
        %v1524 = vpow.pop %v1523
        %v1525 = vmul.f32 %v1357, 1.442695
        %v1526 = vpow.pop %v1525
        %v1527 = vmul.f32 %v1358, 1.442695
        %v1528 = vpow.pop %v1527
        %v1529 = vmul.f32 %v1359, 1.442695
        %v1530 = vpow.pop %v1529
        %v1531 = vmul.f32 %v1360, 1.442695
        %v1532 = vpow.pop %v1531
        %v1533 = vmul.f32 %v1361, 1.442695
        %v1534 = vpow.pop %v1533
        %v1535 = vmul.f32 %v1362, 1.442695
        %v1536 = vpow.pop %v1535
        %v1537 = vmul.f32 %v1363, 1.442695
        %v1538 = vpow.pop %v1537
        %v1539 = vmul.f32 %v1364, 1.442695
        %v1540 = vpow.pop %v1539
        %v1541 = vmul.f32 %v1365, 1.442695
        %v1542 = vpow.pop %v1541
        %v1543 = vmul.f32 %v1366, 1.442695
        %v1544 = vpow.pop %v1543
        %v1545 = vmul.f32 %v1367, 1.442695
        %v1546 = vpow.pop %v1545
        %v1547 = vmul.f32 %v1368, 1.442695
        %v1548 = vpow.pop %v1547
        %v1549 = vmul.f32 %v1369, 1.442695
        %v1550 = vpow.pop %v1549
        %v1551 = vmul.f32 %v1370, 1.442695
        %v1552 = vpow.pop %v1551
        %v1553 = vmul.f32 %v1371, 1.442695
        %v1554 = vpow.pop %v1553
        %v1555 = vmul.f32 %v1372, 1.442695
        %v1556 = vpow.pop %v1555
        %v1557 = vmul.f32 %v1373, 1.442695
        %v1558 = vpow.pop %v1557
        %v1559 = vmul.f32 %v1374, 1.442695
        %v1560 = vpow.pop %v1559
        %v1561 = vmul.f32 %v1375, 1.442695
        %v1562 = vpow.pop %v1561
        %v1563 = vmul.f32 %v1376, 1.442695
        %v1564 = vpow.pop %v1563
        %v1565 = vmul.f32 %v1377, 1.442695
        %v1566 = vpow.pop %v1565
        %v1567 = vmul.f32 %v1378, 1.442695
        %v1568 = vpow.pop %v1567
        %v1569 = vmul.f32 %v1379, 1.442695
        %v1570 = vpow.pop %v1569
        %v1571 = vmul.f32 %v1380, 1.442695
        %v1572 = vpow.pop %v1571
        %v1573 = vmul.f32 %v1381, 1.442695
        %v1574 = vpow.pop %v1573
        %v1575 = vmul.f32 %v1382, 1.442695
        %v1576 = vpow.pop %v1575
        %v1577 = vmul.f32 %v1383, 1.442695
        %v1578 = vpow.pop %v1577
        %v1579 = vmul.f32 %v1384, 1.442695
        %v1580 = vpow.pop %v1579
        %v1581 = vmul.f32 %v1385, 1.442695
        %v1582 = vpow.pop %v1581
        %v1583 = vmul.f32 %v1386, 1.442695
        %v1584 = vpow.pop %v1583
        %v1585 = vmul.f32 %v1387, 1.442695
        %v1586 = vpow.pop %v1585
        %v1587 = vmul.f32 %v1388, 1.442695
        %v1588 = vpow.pop %v1587
        %v1589 = vmul.f32 %v1389, 1.442695
        %v1590 = vpow.pop %v1589
        %v1591 = vmul.f32 %v1390, 1.442695
        %v1592 = vpow.pop %v1591
        %v1593 = vmul.f32 %v1391, 1.442695
        %v1594 = vpow.pop %v1593
        %v1595 = vmul.f32 %v1392, 1.442695
        %v1596 = vpow.pop %v1595
        %v1597 = vmul.f32 %v1393, 1.442695
        %v1598 = vpow.pop %v1597
        %v1599 = vmul.f32 %v1394, 1.442695
        %v1600 = vpow.pop %v1599
        %v1601 = vmul.f32 %v1395, 1.442695
        %v1602 = vpow.pop %v1601
        %v1603 = vmul.f32 %v1396, 1.442695
        %v1604 = vpow.pop %v1603
        %v1605 = vmul.f32 %v1397, 1.442695
        %v1606 = vpow.pop %v1605
        %v1607 = vmul.f32 %v1398, 1.442695
        %v1608 = vpow.pop %v1607
        %v1609 = vmul.f32 %v1399, 1.442695
        %v1610 = vpow.pop %v1609
        %v1611 = vmul.f32 %v1400, 1.442695
        %v1612 = vpow.pop %v1611
        %v1613 = vmul.f32 %v1401, 1.442695
        %v1614 = vpow.pop %v1613
        %v1615 = vmul.f32 %v1402, 1.442695
        %v1616 = vpow.pop %v1615
        %v1617 = vmul.f32 %v1403, 1.442695
        %v1618 = vpow.pop %v1617
        %v1619 = vmul.f32 %v1404, 1.442695
        %v1620 = vpow.pop %v1619
        %v1621 = vmul.f32 %v1405, 1.442695
        %v1622 = vpow.pop %v1621
        %v1623 = vmul.f32 %v1406, 1.442695
        %v1624 = vpow.pop %v1623
        %v1625 = vmul.f32 %v1407, 1.442695
        %v1626 = vpow.pop %v1625
        %v1627 = vmul.f32 %v1408, 1.442695
        %v1628 = vpow.pop %v1627
        %v1629 = vmul.f32 %v1409, 1.442695
        %v1630 = vpow.pop %v1629
        %v1631 = vmul.f32 %v1410, 1.442695
        %v1632 = vpow.pop %v1631
        %v1633 = vmul.f32 %v1411, 1.442695
        %v1634 = vpow.pop %v1633
        %v1635 = vmul.f32 %v1412, 1.442695
        %v1636 = vpow.pop %v1635
        %v1637 = vmul.f32 %v1413, 1.442695
        %v1638 = vpow.pop %v1637
        %v1639 = vmul.f32 %v1414, 1.442695
        %v1640 = vpow.pop %v1639
        %v1641 = vmul.f32 %v1415, 1.442695
        %v1642 = vpow.pop %v1641
        %v1643 = vmul.f32 %v1416, 1.442695
        %v1644 = vpow.pop %v1643
        %v1645 = vmul.f32 %v1417, 1.442695
        %v1646 = vpow.pop %v1645
        %v1647 = vmul.f32 %v1418, 1.442695
        %v1648 = vpow.pop %v1647
        %v1649 = vmul.f32 %v1419, 1.442695
        %v1650 = vpow.pop %v1649
        %v1651 = vmul.f32 %v1420, 1.442695
        %v1652 = vpow.pop %v1651
        %v1653 = vmul.f32 %v1421, 1.442695
        %v1654 = vpow.pop %v1653
        %v1655 = vmul.f32 %v1422, 1.442695
        %v1656 = vpow.pop %v1655
        %v1657 = vmul.f32 %v1423, 1.442695
        %v1658 = vpow.pop %v1657
        %v1659 = vmul.f32 %v1424, 1.442695
        %v1660 = vpow.pop %v1659
        %v1661 = vmul.f32 %v1425, 1.442695
        %v1662 = vpow.pop %v1661
        %v1663 = vmul.f32 %v1426, 1.442695
        %v1664 = vpow.pop %v1663
        %v1665 = vmul.f32 %v1427, 1.442695
        %v1666 = vpow.pop %v1665
        %v1667 = vmul.f32 %v1428, 1.442695
        %v1668 = vpow.pop %v1667
        %v1669 = vmul.f32 %v1429, 1.442695
        %v1670 = vpow.pop %v1669
        %v1671 = vmul.f32 %v1430, 1.442695
        %v1672 = vpow.pop %v1671
        %v1673 = vmul.f32 %v1431, 1.442695
        %v1674 = vpow.pop %v1673
        %v1675 = vmul.f32 %v1432, 1.442695
        %v1676 = vpow.pop %v1675
        %v1677 = vmul.f32 %v1433, 1.442695
        %v1678 = vpow.pop %v1677
        %v1679 = vmul.f32 %v1434, 1.442695
        %v1680 = vpow.pop %v1679
        %v1681 = vmul.f32 %v1435, 1.442695
        %v1682 = vpow.pop %v1681
        %v1683 = vmul.f32 %v1436, 1.442695
        %v1684 = vpow.pop %v1683
        %v1685 = vmul.f32 %v1437, 1.442695
        %v1686 = vpow.pop %v1685
        %v1687 = vmul.f32 %v1438, 1.442695
        %v1688 = vpow.pop %v1687
        %v1689 = vmul.f32 %v1439, 1.442695
        %v1690 = vpow.pop %v1689
        %v1691 = vmul.f32 %v1440, 1.442695
        %v1692 = vpow.pop %v1691
        %v1693 = vmul.f32 %v1441, 1.442695
        %v1694 = vpow.pop %v1693
        %v1695 = vmul.f32 %v1442, 1.442695
        %v1696 = vpow.pop %v1695
        %v1697 = vmul.f32 %v1443, 1.442695
        %v1698 = vpow.pop %v1697
        %v1699 = vmul.f32 %v1444, 1.442695
        %v1700 = vpow.pop %v1699
        %1701 = vst [vmem:[%s299] sm:$0xff] %v1446
        %1702 = vst [vmem:[%s299 + $0x8] sm:$0xff] %v1448
        %1703 = vst [vmem:[%s299 + $0x10] sm:$0xff] %v1450
        %1704 = vst [vmem:[%s299 + $0x18] sm:$0xff] %v1452
        %1705 = vst [vmem:[%s299 + $0x20] sm:$0xff] %v1454
        %1706 = vst [vmem:[%s299 + $0x28] sm:$0xff] %v1456
        %1707 = vst [vmem:[%s299 + $0x30] sm:$0xff] %v1458
        %1708 = vst [vmem:[%s299 + $0x38] sm:$0xff] %v1460
        %1709 = vst [vmem:[%s299 + $0x40] sm:$0xff] %v1462
        %1710 = vst [vmem:[%s299 + $0x48] sm:$0xff] %v1464
        %1711 = vst [vmem:[%s299 + $0x50] sm:$0xff] %v1466
        %1712 = vst [vmem:[%s299 + $0x58] sm:$0xff] %v1468
        %1713 = vst [vmem:[%s299 + $0x60] sm:$0xff] %v1470
        %1714 = vst [vmem:[%s299 + $0x68] sm:$0xff] %v1472
        %1715 = vst [vmem:[%s299 + $0x70] sm:$0xff] %v1474
        %1716 = vst [vmem:[%s299 + $0x78] sm:$0xff] %v1476
        %1717 = vst [vmem:[%s299 + $0x80] sm:$0xff] %v1478
        %1718 = vst [vmem:[%s299 + $0x88] sm:$0xff] %v1480
        %1719 = vst [vmem:[%s299 + $0x90] sm:$0xff] %v1482
        %1720 = vst [vmem:[%s299 + $0x98] sm:$0xff] %v1484
        %1721 = vst [vmem:[%s299 + $0xa0] sm:$0xff] %v1486
        %1722 = vst [vmem:[%s299 + $0xa8] sm:$0xff] %v1488
        %1723 = vst [vmem:[%s299 + $0xb0] sm:$0xff] %v1490
        %1724 = vst [vmem:[%s299 + $0xb8] sm:$0xff] %v1492
        %1725 = vst [vmem:[%s299 + $0xc0] sm:$0xff] %v1494
        %1726 = vst [vmem:[%s299 + $0xc8] sm:$0xff] %v1496
        %1727 = vst [vmem:[%s299 + $0xd0] sm:$0xff] %v1498
        %1728 = vst [vmem:[%s299 + $0xd8] sm:$0xff] %v1500
        %1729 = vst [vmem:[%s299 + $0xe0] sm:$0xff] %v1502
        %1730 = vst [vmem:[%s299 + $0xe8] sm:$0xff] %v1504
        %1731 = vst [vmem:[%s299 + $0xf0] sm:$0xff] %v1506
        %1732 = vst [vmem:[%s299 + $0xf8] sm:$0xff] %v1508
        %1733 = vst [vmem:[%s299 + $0x100] sm:$0xff] %v1510
        %1734 = vst [vmem:[%s299 + $0x108] sm:$0xff] %v1512
        %1735 = vst [vmem:[%s299 + $0x110] sm:$0xff] %v1514
        %1736 = vst [vmem:[%s299 + $0x118] sm:$0xff] %v1516
        %1737 = vst [vmem:[%s299 + $0x120] sm:$0xff] %v1518
        %1738 = vst [vmem:[%s299 + $0x128] sm:$0xff] %v1520
        %1739 = vst [vmem:[%s299 + $0x130] sm:$0xff] %v1522
        %1740 = vst [vmem:[%s299 + $0x138] sm:$0xff] %v1524
        %1741 = vst [vmem:[%s299 + $0x140] sm:$0xff] %v1526
        %1742 = vst [vmem:[%s299 + $0x148] sm:$0xff] %v1528
        %1743 = vst [vmem:[%s299 + $0x150] sm:$0xff] %v1530
        %1744 = vst [vmem:[%s299 + $0x158] sm:$0xff] %v1532
        %1745 = vst [vmem:[%s299 + $0x160] sm:$0xff] %v1534
        %1746 = vst [vmem:[%s299 + $0x168] sm:$0xff] %v1536
        %1747 = vst [vmem:[%s299 + $0x170] sm:$0xff] %v1538
        %1748 = vst [vmem:[%s299 + $0x178] sm:$0xff] %v1540
        %1749 = vst [vmem:[%s299 + $0x180] sm:$0xff] %v1542
        %1750 = vst [vmem:[%s299 + $0x188] sm:$0xff] %v1544
        %1751 = vst [vmem:[%s299 + $0x190] sm:$0xff] %v1546
        %1752 = vst [vmem:[%s299 + $0x198] sm:$0xff] %v1548
        %1753 = vst [vmem:[%s299 + $0x1a0] sm:$0xff] %v1550
        %1754 = vst [vmem:[%s299 + $0x1a8] sm:$0xff] %v1552
        %1755 = vst [vmem:[%s299 + $0x1b0] sm:$0xff] %v1554
        %1756 = vst [vmem:[%s299 + $0x1b8] sm:$0xff] %v1556
        %1757 = vst [vmem:[%s299 + $0x1c0] sm:$0xff] %v1558
        %1758 = vst [vmem:[%s299 + $0x1c8] sm:$0xff] %v1560
        %1759 = vst [vmem:[%s299 + $0x1d0] sm:$0xff] %v1562
        %1760 = vst [vmem:[%s299 + $0x1d8] sm:$0xff] %v1564
        %1761 = vst [vmem:[%s299 + $0x1e0] sm:$0xff] %v1566
        %1762 = vst [vmem:[%s299 + $0x1e8] sm:$0xff] %v1568
        %1763 = vst [vmem:[%s299 + $0x1f0] sm:$0xff] %v1570
        %1764 = vst [vmem:[%s299 + $0x1f8] sm:$0xff] %v1572
        %1765 = vst [vmem:[%s299 + $0x200] sm:$0xff] %v1574
        %1766 = vst [vmem:[%s299 + $0x208] sm:$0xff] %v1576
        %1767 = vst [vmem:[%s299 + $0x210] sm:$0xff] %v1578
        %1768 = vst [vmem:[%s299 + $0x218] sm:$0xff] %v1580
        %1769 = vst [vmem:[%s299 + $0x220] sm:$0xff] %v1582
        %1770 = vst [vmem:[%s299 + $0x228] sm:$0xff] %v1584
        %1771 = vst [vmem:[%s299 + $0x230] sm:$0xff] %v1586
        %1772 = vst [vmem:[%s299 + $0x238] sm:$0xff] %v1588
        %1773 = vst [vmem:[%s299 + $0x240] sm:$0xff] %v1590
        %1774 = vst [vmem:[%s299 + $0x248] sm:$0xff] %v1592
        %1775 = vst [vmem:[%s299 + $0x250] sm:$0xff] %v1594
        %1776 = vst [vmem:[%s299 + $0x258] sm:$0xff] %v1596
        %1777 = vst [vmem:[%s299 + $0x260] sm:$0xff] %v1598
        %1778 = vst [vmem:[%s299 + $0x268] sm:$0xff] %v1600
        %1779 = vst [vmem:[%s299 + $0x270] sm:$0xff] %v1602
        %1780 = vst [vmem:[%s299 + $0x278] sm:$0xff] %v1604
        %1781 = vst [vmem:[%s299 + $0x280] sm:$0xff] %v1606
        %1782 = vst [vmem:[%s299 + $0x288] sm:$0xff] %v1608
        %1783 = vst [vmem:[%s299 + $0x290] sm:$0xff] %v1610
        %1784 = vst [vmem:[%s299 + $0x298] sm:$0xff] %v1612
        %1785 = vst [vmem:[%s299 + $0x2a0] sm:$0xff] %v1614
        %1786 = vst [vmem:[%s299 + $0x2a8] sm:$0xff] %v1616
        %1787 = vst [vmem:[%s299 + $0x2b0] sm:$0xff] %v1618
        %1788 = vst [vmem:[%s299 + $0x2b8] sm:$0xff] %v1620
        %1789 = vst [vmem:[%s299 + $0x2c0] sm:$0xff] %v1622
        %1790 = vst [vmem:[%s299 + $0x2c8] sm:$0xff] %v1624
        %1791 = vst [vmem:[%s299 + $0x2d0] sm:$0xff] %v1626
        %1792 = vst [vmem:[%s299 + $0x2d8] sm:$0xff] %v1628
        %1793 = vst [vmem:[%s299 + $0x2e0] sm:$0xff] %v1630
        %1794 = vst [vmem:[%s299 + $0x2e8] sm:$0xff] %v1632
        %1795 = vst [vmem:[%s299 + $0x2f0] sm:$0xff] %v1634
        %1796 = vst [vmem:[%s299 + $0x2f8] sm:$0xff] %v1636
        %1797 = vst [vmem:[%s299 + $0x300] sm:$0xff] %v1638
        %1798 = vst [vmem:[%s299 + $0x308] sm:$0xff] %v1640
        %1799 = vst [vmem:[%s299 + $0x310] sm:$0xff] %v1642
        %1800 = vst [vmem:[%s299 + $0x318] sm:$0xff] %v1644
        %1801 = vst [vmem:[%s299 + $0x320] sm:$0xff] %v1646
        %1802 = vst [vmem:[%s299 + $0x328] sm:$0xff] %v1648
        %1803 = vst [vmem:[%s299 + $0x330] sm:$0xff] %v1650
        %1804 = vst [vmem:[%s299 + $0x338] sm:$0xff] %v1652
        %1805 = vst [vmem:[%s299 + $0x340] sm:$0xff] %v1654
        %1806 = vst [vmem:[%s299 + $0x348] sm:$0xff] %v1656
        %1807 = vst [vmem:[%s299 + $0x350] sm:$0xff] %v1658
        %1808 = vst [vmem:[%s299 + $0x358] sm:$0xff] %v1660
        %1809 = vst [vmem:[%s299 + $0x360] sm:$0xff] %v1662
        %1810 = vst [vmem:[%s299 + $0x368] sm:$0xff] %v1664
        %1811 = vst [vmem:[%s299 + $0x370] sm:$0xff] %v1666
        %1812 = vst [vmem:[%s299 + $0x378] sm:$0xff] %v1668
        %1813 = vst [vmem:[%s299 + $0x380] sm:$0xff] %v1670
        %1814 = vst [vmem:[%s299 + $0x388] sm:$0xff] %v1672
        %1815 = vst [vmem:[%s299 + $0x390] sm:$0xff] %v1674
        %1816 = vst [vmem:[%s299 + $0x398] sm:$0xff] %v1676
        %1817 = vst [vmem:[%s299 + $0x3a0] sm:$0xff] %v1678
        %1818 = vst [vmem:[%s299 + $0x3a8] sm:$0xff] %v1680
        %1819 = vst [vmem:[%s299 + $0x3b0] sm:$0xff] %v1682
        %1820 = vst [vmem:[%s299 + $0x3b8] sm:$0xff] %v1684
        %1821 = vst [vmem:[%s299 + $0x3c0] sm:$0xff] %v1686
        %1822 = vst [vmem:[%s299 + $0x3c8] sm:$0xff] %v1688
        %1823 = vst [vmem:[%s299 + $0x3d0] sm:$0xff] %v1690
        %1824 = vst [vmem:[%s299 + $0x3d8] sm:$0xff] %v1692
        %1825 = vst [vmem:[%s299 + $0x3e0] sm:$0xff] %v1694
        %1826 = vst [vmem:[%s299 + $0x3e8] sm:$0xff] %v1696
        %1827 = vst [vmem:[%s299 + $0x3f0] sm:$0xff] %v1698
        %1828 = vst [vmem:[%s299 + $0x3f8] sm:$0xff] %v1700
        %s1829 = sand.u32 %s150, 1
        %s1830 = scalar_lea.sflag [#allocation4], %s1829
        %s1831 = sand.u32 %s150, 1
        %s1832 = smul.addr %s1831, 1024
        %s1833 = scalar_lea.vmem [#allocation7], %s1832
        // Predicated region
        $region45: #{tpu_custom_call.1} parent=35 // pred_check
          %p1834 = pneg %p160
        $region46: #{tpu_custom_call.1} parent=35 // pred_check_branch
          %1836 = sbr.rel (%p1834) target = $region48
        $region47: #{tpu_custom_call.1} parent=35 // pred_region
          %s1837 = smul.u32 32, %s28
          %s1838 = smul.u32 4, %s29
          %s1840 = ssub.s32 16384, 16384
          %1841 = vsyncadd %s1830, %s1840
          %s1842 = smul.addr %s1837, 8
          %s1843 = sadd.s32 %s1838, %s1842
          %s1844 = smul.addr %s1843, 128
          %s1845 = scalar_lea.hbm %s4, %s1844
          %s1846 = sshll.u32 %s1833, 4
          %s1847 = int_to_ptr.vmem [resolvable:$true] %s1846
          %1852 = dma.vmem_to_hbm [thread:$0]  %s1847, 16384, %s1845, %s1830, 512, 1024, 32
        $region48: #{tpu_custom_call.1} parent=35 // pred_fallthru
          _
      $region36: #{tpu_custom_call.1} parent=5 // pred_fallthru
        _
      %p1853 = scmp.le.s32.totalorder 2, %s19
      // Predicated region
      $region49: #{tpu_custom_call.1} parent=5 // pred_check
        %p1854 = pneg %p1853
      $region50: #{tpu_custom_call.1} parent=5 // pred_check_branch
        %1856 = sbr.rel (%p1854) target = $region52
      $region51: #{tpu_custom_call.1} parent=5 // pred_region
        %s1857 = ssub.s32 %s19, 2
        // Predicated region
        $region53: #{tpu_custom_call.1} parent=51 // pred_check
          %p1858 = pneg %p166
        $region54: #{tpu_custom_call.1} parent=51 // pred_check_branch
          %1860 = sbr.rel (%p1858) target = $region56
        $region55: #{tpu_custom_call.1} parent=51 // pred_region
          %s1861 = sand.u32 %s151, 1
          %s1862 = scalar_lea.sflag [#allocation4], %s1861
          %s1863 = sand.u32 %s151, 1
          %s1864 = smul.addr %s1863, 1024
          %s1865 = scalar_lea.vmem [#allocation7], %s1864
          %1866 = dma.done %s1862, 16384
        $region56: #{tpu_custom_call.1} parent=51 // pred_fallthru
          _
      $region52: #{tpu_custom_call.1} parent=5 // pred_fallthru
        _
    $region6: #{tpu_custom_call.1} parent=1 // loop_footer
      %s23 = sadd.s32 1, %s19
    $region7: #{tpu_custom_call.1} parent=1 // loop_footer_branch
      %18 = sbr.rel target = $region3
    $region8: #{tpu_custom_call.1} parent=1 // loop_exit
      _
    %1867 = vsyncpa [#allocation3], 1
    %s1868 = scalar_lea.sflag [#allocation3], 1
    %1869 = vsyncpa %s1868, 1
    %1870 = vsyncpa [#allocation6], 1
    %s1871 = scalar_lea.sflag [#allocation6], 1
    %1872 = vsyncpa %s1871, 1
    %1873 = vsyncpa [#allocation4], 1
    %s1874 = scalar_lea.sflag [#allocation4], 1
    %1875 = vsyncpa %s1874, 1

</llo_original>
